<compile_context>
chip_gen: v5e
topology: v5e:2x2
jax: 0.10.0
libtpu: 0.0.40
codegen_flags: <defaults>
</compile_context>

<pallas_src>
import jax
import jax.numpy as jnp
from jax.experimental import pallas as pl
from jax.experimental.pallas import tpu as pltpu

# ----- module hyper-parameters (CNNSpectrogram.__init__ defaults, small F) ----
IN_CHANNELS = 3
BASE_FILTERS = 64              # "height" of the spectrogram (module default 128)
KERNEL_SIZES = (32, 16, 4, 2)  # -> out_chans = 4
STRIDE = 4
SIGMOID = False
OUT_SIZE = None                # AdaptiveAvgPool2d branch not taken

# Lane tile over t_out (multiple of 128).  At tt=2048, B=2, f32 the kernel uses
# ~15 MiB VMEM (out 2x4 MiB double-buffered + patch 1.75 MiB + input + weights).
TIME_TILE = 2048

# f32 for a tight comparison with the f32 reference conv.  Flip to jnp.bfloat16
# on v6e/v7x for ~2x fewer patch-store / DMA bytes and the native MXU rate
# (accumulation stays f32; the self-test tolerance widens automatically).
COMPUTE_DTYPE = jnp.float32


def _round_up(a, m):
    return (a + m - 1) // m * m


def _make_fused_kernel(n_off, n_ch, batch, tt, kc_all, ck_pad, dtype):
    """All branches fused: build one im2col patch matrix in VMEM, one matmul."""
    s = STRIDE
    n_q = n_off // s  # taps per stride-phase (32 offsets / stride 4 = 8)

    def kernel(x_ref, w_ref, o_ref, patch_ref):
        # x_ref:     (1, B*s*C, ttq)  phase-split input tile (+ q_max halo)
        # w_ref:     (4F, ck_pad)     stacked tap-major weights + fused bias col
        # o_ref:     (1, 4F, B*tt)
        # patch_ref: (ck_pad, B*tt)   VMEM im2col scratch
        #
        # Rows >= kc_all are the bias ("ones") row plus a few padding rows; the
        # padding rows multiply exactly-zero weight columns, so filling them all
        # with ones is exact and avoids reading uninitialized VMEM.
        patch_ref[kc_all:, :] = jnp.ones((ck_pad - kc_all, batch * tt), dtype)

        for b in range(batch):
            col = b * tt
            for r in range(s):
                row0 = (b * s + r) * n_ch
                win = x_ref[0, row0:row0 + n_ch, :]          # (C, ttq), 1 load/phase
                for q in range(n_q):                          # static lane shifts
                    off = q * s + r
                    patch_ref[off * n_ch:(off + 1) * n_ch,
                              col:col + tt] = win[:, q:q + tt]

        acc = jnp.dot(w_ref[...], patch_ref[...],
                      preferred_element_type=jnp.float32)     # (4F, B*tt)
        o_ref[0] = acc.astype(o_ref.dtype)                    # single dense store

    return kernel


def cnn_spectrogram_forward(x, weights, biases):
    """x: (B, C, T) f32; weights[i]: (F, C, k_i); biases[i]: (F,).
    Returns (B, out_chans, F, T_out) f32."""
    B, C, T = x.shape
    F = weights[0].shape[0]
    s = STRIDE
    ks = KERNEL_SIZES
    n_br = len(ks)
    pads = [(k - 1) // 2 for k in ks]
    t_outs = [(T + 2 * p - k) // s + 1 for k, p in zip(ks, pads)]
    assert len(set(t_outs)) == 1, "branch output lengths must match for stack"
    t_out = t_outs[0]

    # ---- unified tap set -----------------------------------------------------
    # conv needs x[t*s + j - pad_k]; with global left pad P this is
    # x_gpad[t*s + off], off = j - pad_k + P.  All branches' offsets lie in
    # [0, n_off) because P = max(pad).
    P = max(pads)
    n_off = max(k - 1 - p for k, p in zip(ks, pads)) + P + 1        # = 32
    assert all(P - p >= 0 and (k - 1 - p + P) < n_off for k, p in zip(ks, pads))
    q_max = (n_off - 1) // s                                        # = 7
    kc_all = n_off * C                                              # data rows
    mult = 16 if COMPUTE_DTYPE == jnp.bfloat16 else 8               # sublane pack
    ck_pad = _round_up(kc_all + 1, mult)                            # +1 bias row

    # ---- time tiling (>= 2 grid steps when possible, for v7x megacore) -------
    t128 = _round_up(t_out, 128)
    tt = min(TIME_TILE, t128)
    if t128 // 128 >= 2:
        tt = min(tt, ((t128 // 128 + 1) // 2) * 128)
    assert tt % 128 == 0
    t_out_pad = _round_up(t_out, tt)
    nt = t_out_pad // tt
    ttq = tt + q_max                        # per-tile halo in phase-time units

    # ---- glue (plain JAX): pad -> phase split -> dense (nt, B*s*C, ttq) ------
    t_ph = nt * tt + q_max
    t_gpad = t_ph * s
    right = t_gpad - T - P
    assert right >= 0
    x_gpad = jnp.pad(x, ((0, 0), (0, 0), (P, right)))
    # x_ph[b, r, c, u] = x_gpad[b, c, u*s + r]
    x_ph = x_gpad.reshape(B, C, t_ph, s).transpose(0, 3, 1, 2)      # (B, s, C, t_ph)
    x_merged = x_ph.reshape(B * s * C, t_ph)
    u_idx = (jnp.arange(nt) * tt)[:, None] + jnp.arange(ttq)[None, :]
    x_tiles = x_merged[:, u_idx].transpose(1, 0, 2).astype(COMPUTE_DTYPE)
    # x_tiles: (nt, B*s*C, ttq) -> one contiguous input DMA per grid step.

    # ---- fused weights: branches stacked on M, taps placed by global offset --
    w_rows = n_br * F
    w_aug = jnp.zeros((w_rows, ck_pad), jnp.float32)
    for i, (k, p) in enumerate(zip(ks, pads)):
        off0 = (P - p) * C
        wm = weights[i].transpose(0, 2, 1).reshape(F, k * C)   # tap-major (j, c)
        w_aug = w_aug.at[i * F:(i + 1) * F, off0:off0 + k * C].set(wm)
        w_aug = w_aug.at[i * F:(i + 1) * F, kc_all].set(biases[i])
    w_aug = w_aug.astype(COMPUTE_DTYPE)

    kern = _make_fused_kernel(n_off, C, B, tt, kc_all, ck_pad, COMPUTE_DTYPE)
    y = pl.pallas_call(
        kern,
        out_shape=jax.ShapeDtypeStruct((nt, w_rows, B * tt), jnp.float32),
        grid_spec=pltpu.PrefetchScalarGridSpec(
            num_scalar_prefetch=0,
            grid=(nt,),
            in_specs=[
                # leading-nt input tiles; weights resident for the whole grid
                pl.BlockSpec((1, B * s * C, ttq), lambda n: (n, 0, 0)),
                pl.BlockSpec((w_rows, ck_pad), lambda n: (0, 0)),
            ],
            out_specs=pl.BlockSpec((1, w_rows, B * tt), lambda n: (n, 0, 0)),
            scratch_shapes=[pltpu.VMEM((ck_pad, B * tt), COMPUTE_DTYPE)],
        ),
        compiler_params=pltpu.CompilerParams(
            dimension_semantics=("parallel",),
            vmem_limit_bytes=32 * 1024 * 1024,
        ),
    )(x_tiles, w_aug)

    # (nt, 4F, B*tt) -> (B, out_chans, F, t_out): wrapper-side layout plumbing.
    img = (y.reshape(nt, n_br, F, B, tt)
             .transpose(3, 1, 2, 0, 4)
             .reshape(B, n_br, F, nt * tt)[:, :, :, :t_out])
    # TODO(synk): AdaptiveAvgPool2d branch only fires when output_size is set;
    # with the default output_size=None it is skipped (matching the reference).
    if SIGMOID:
        img = jax.nn.sigmoid(img)
    return img


def reference_forward(x, weights, biases):
    """Pure-JAX reference replicating the PyTorch forward (for verification)."""
    outs = []
    for i, k in enumerate(KERNEL_SIZES):
        pad = (k - 1) // 2
        y = jax.lax.conv_general_dilated(
            x, weights[i], window_strides=(STRIDE,), padding=[(pad, pad)],
            dimension_numbers=("NCH", "OIH", "NCH"))
        y = y + biases[i][None, :, None]
        outs.append(y)
    return jnp.stack(outs, axis=1)


def init_params(key):
    """Deterministic init mirroring __init__: kaiming_normal_ weights,
    default-uniform Conv1d bias."""
    weights, biases = [], []
    for k in KERNEL_SIZES:
        key, wk, bk = jax.random.split(key, 3)
        fan_in = IN_CHANNELS * k
        std = (2.0 / fan_in) ** 0.5
        weights.append(std * jax.random.normal(
            wk, (BASE_FILTERS, IN_CHANNELS, k), jnp.float32))
        bound = 1.0 / fan_in ** 0.5
        biases.append(jax.random.uniform(
            bk, (BASE_FILTERS,), jnp.float32, -bound, bound))
    return weights, biases


if __name__ == "__main__":
    B, C, T = 2, IN_CHANNELS, 1024   # x: (batch, in_channels, time_steps)
    key = jax.random.PRNGKey(0)
    key, xk = jax.random.split(key)
    x = jax.random.normal(xk, (B, C, T), jnp.float32)
    weights, biases = init_params(key)

    fwd = jax.jit(cnn_spectrogram_forward)
    out = jax.block_until_ready(fwd(x, weights, biases))

    ref = jax.block_until_ready(reference_forward(x, weights, biases))
    t_out = (T - 2) // STRIDE + 1
    assert out.shape == (B, len(KERNEL_SIZES), BASE_FILTERS, t_out), out.shape
    tol = 2e-3 if COMPUTE_DTYPE == jnp.float32 else 3e-2
    max_err = jnp.max(jnp.abs(out - ref))
    assert jnp.allclose(out, ref, atol=tol, rtol=tol), f"max abs err {max_err}"

    print("KERNEL_OK")
</pallas_src>

<mosaic_0001>
module attributes {stable_mosaic.version = 11 : i64} {
  func.func @kernel(%arg0: i32, %arg1: memref<1x24x135xf32, #tpu.memory_space<vmem>>, %arg2: memref<256x104xf32, #tpu.memory_space<vmem>>, %arg3: memref<1x256x256xf32, #tpu.memory_space<vmem>>, %arg4: memref<104x256xf32, #tpu.memory_space<vmem>>) attributes {dimension_semantics = [#tpu.dimension_semantics<parallel>], iteration_bounds = array<i64: 2>, scalar_prefetch = 0 : i64, scratch_operands = 1 : i64, tpu.core_type = #tpu.core_type<tc>, window_params = [{transform_indices = @transform_0, window_bounds = array<i64: 1, 24, 135>}, {pipeline_mode = #tpu.pipeline_mode<synchronous>, transform_indices = @transform_1, window_bounds = array<i64: 256, 104>}, {transform_indices = @transform_2, window_bounds = array<i64: 1, 256, 256>}]} {
    %cst = arith.constant 1.000000e+00 : f32
    %0 = vector.broadcast %cst : f32 to vector<8x256xf32>
    %c96 = arith.constant 96 : index
    %c0 = arith.constant 0 : index
    %1 = vector.load %arg4[%c96, %c0] : memref<104x256xf32, #tpu.memory_space<vmem>>, vector<8x256xf32>
    tpu.vector_store %arg4[%c96, %c0], %0 {strides = array<i32>} : memref<104x256xf32, #tpu.memory_space<vmem>>, vector<8x256xf32>,
    %c0_0 = arith.constant 0 : index
    %c0_1 = arith.constant 0 : index
    %c0_2 = arith.constant 0 : index
    %2 = vector.load %arg1[%c0_0, %c0_1, %c0_2] : memref<1x24x135xf32, #tpu.memory_space<vmem>>, vector<1x3x135xf32>
    %3 = vector.shape_cast %2 : vector<1x3x135xf32> to vector<3x135xf32>
    %4 = vector.extract_strided_slice %3 {offsets = [0, 0], sizes = [3, 128], strides = [1, 1]} : vector<3x135xf32> to vector<3x128xf32>
    %c0_3 = arith.constant 0 : index
    %c0_4 = arith.constant 0 : index
    %5 = vector.load %arg4[%c0_3, %c0_4] : memref<104x256xf32, #tpu.memory_space<vmem>>, vector<3x128xf32>
    tpu.vector_store %arg4[%c0_3, %c0_4], %4 {strides = array<i32>} : memref<104x256xf32, #tpu.memory_space<vmem>>, vector<3x128xf32>,
    %6 = vector.extract_strided_slice %3 {offsets = [0, 1], sizes = [3, 128], strides = [1, 1]} : vector<3x135xf32> to vector<3x128xf32>
    %c12 = arith.constant 12 : index
    %c0_5 = arith.constant 0 : index
    %7 = vector.load %arg4[%c12, %c0_5] : memref<104x256xf32, #tpu.memory_space<vmem>>, vector<3x128xf32>
    tpu.vector_store %arg4[%c12, %c0_5], %6 {strides = array<i32>} : memref<104x256xf32, #tpu.memory_space<vmem>>, vector<3x128xf32>,
    %8 = vector.extract_strided_slice %3 {offsets = [0, 2], sizes = [3, 128], strides = [1, 1]} : vector<3x135xf32> to vector<3x128xf32>
    %c24 = arith.constant 24 : index
    %c0_6 = arith.constant 0 : index
    %9 = vector.load %arg4[%c24, %c0_6] : memref<104x256xf32, #tpu.memory_space<vmem>>, vector<3x128xf32>
    tpu.vector_store %arg4[%c24, %c0_6], %8 {strides = array<i32>} : memref<104x256xf32, #tpu.memory_space<vmem>>, vector<3x128xf32>,
    %10 = vector.extract_strided_slice %3 {offsets = [0, 3], sizes = [3, 128], strides = [1, 1]} : vector<3x135xf32> to vector<3x128xf32>
    %c36 = arith.constant 36 : index
    %c0_7 = arith.constant 0 : index
    %11 = vector.load %arg4[%c36, %c0_7] : memref<104x256xf32, #tpu.memory_space<vmem>>, vector<3x128xf32>
    tpu.vector_store %arg4[%c36, %c0_7], %10 {strides = array<i32>} : memref<104x256xf32, #tpu.memory_space<vmem>>, vector<3x128xf32>,
    %12 = vector.extract_strided_slice %3 {offsets = [0, 4], sizes = [3, 128], strides = [1, 1]} : vector<3x135xf32> to vector<3x128xf32>
    %c48 = arith.constant 48 : index
    %c0_8 = arith.constant 0 : index
    %13 = vector.load %arg4[%c48, %c0_8] : memref<104x256xf32, #tpu.memory_space<vmem>>, vector<3x128xf32>
    tpu.vector_store %arg4[%c48, %c0_8], %12 {strides = array<i32>} : memref<104x256xf32, #tpu.memory_space<vmem>>, vector<3x128xf32>,
    %14 = vector.extract_strided_slice %3 {offsets = [0, 5], sizes = [3, 128], strides = [1, 1]} : vector<3x135xf32> to vector<3x128xf32>
    %c60 = arith.constant 60 : index
    %c0_9 = arith.constant 0 : index
    %15 = vector.load %arg4[%c60, %c0_9] : memref<104x256xf32, #tpu.memory_space<vmem>>, vector<3x128xf32>
    tpu.vector_store %arg4[%c60, %c0_9], %14 {strides = array<i32>} : memref<104x256xf32, #tpu.memory_space<vmem>>, vector<3x128xf32>,
    %16 = vector.extract_strided_slice %3 {offsets = [0, 6], sizes = [3, 128], strides = [1, 1]} : vector<3x135xf32> to vector<3x128xf32>
    %c72 = arith.constant 72 : index
    %c0_10 = arith.constant 0 : index
    %17 = vector.load %arg4[%c72, %c0_10] : memref<104x256xf32, #tpu.memory_space<vmem>>, vector<3x128xf32>
    tpu.vector_store %arg4[%c72, %c0_10], %16 {strides = array<i32>} : memref<104x256xf32, #tpu.memory_space<vmem>>, vector<3x128xf32>,
    %18 = vector.extract_strided_slice %3 {offsets = [0, 7], sizes = [3, 128], strides = [1, 1]} : vector<3x135xf32> to vector<3x128xf32>
    %c84 = arith.constant 84 : index
    %c0_11 = arith.constant 0 : index
    %19 = vector.load %arg4[%c84, %c0_11] : memref<104x256xf32, #tpu.memory_space<vmem>>, vector<3x128xf32>
    tpu.vector_store %arg4[%c84, %c0_11], %18 {strides = array<i32>} : memref<104x256xf32, #tpu.memory_space<vmem>>, vector<3x128xf32>,
    %c0_12 = arith.constant 0 : index
    %c3 = arith.constant 3 : index
    %c0_13 = arith.constant 0 : index
    %20 = vector.load %arg1[%c0_12, %c3, %c0_13] : memref<1x24x135xf32, #tpu.memory_space<vmem>>, vector<1x3x135xf32>
    %21 = vector.shape_cast %20 : vector<1x3x135xf32> to vector<3x135xf32>
    %22 = vector.extract_strided_slice %21 {offsets = [0, 0], sizes = [3, 128], strides = [1, 1]} : vector<3x135xf32> to vector<3x128xf32>
    %c3_14 = arith.constant 3 : index
    %c0_15 = arith.constant 0 : index
    %23 = vector.load %arg4[%c3_14, %c0_15] : memref<104x256xf32, #tpu.memory_space<vmem>>, vector<3x128xf32>
    tpu.vector_store %arg4[%c3_14, %c0_15], %22 {strides = array<i32>} : memref<104x256xf32, #tpu.memory_space<vmem>>, vector<3x128xf32>,
    %24 = vector.extract_strided_slice %21 {offsets = [0, 1], sizes = [3, 128], strides = [1, 1]} : vector<3x135xf32> to vector<3x128xf32>
    %c15 = arith.constant 15 : index
    %c0_16 = arith.constant 0 : index
    %25 = vector.load %arg4[%c15, %c0_16] : memref<104x256xf32, #tpu.memory_space<vmem>>, vector<3x128xf32>
    tpu.vector_store %arg4[%c15, %c0_16], %24 {strides = array<i32>} : memref<104x256xf32, #tpu.memory_space<vmem>>, vector<3x128xf32>,
    %26 = vector.extract_strided_slice %21 {offsets = [0, 2], sizes = [3, 128], strides = [1, 1]} : vector<3x135xf32> to vector<3x128xf32>
    %c27 = arith.constant 27 : index
    %c0_17 = arith.constant 0 : index
    %27 = vector.load %arg4[%c27, %c0_17] : memref<104x256xf32, #tpu.memory_space<vmem>>, vector<3x128xf32>
    tpu.vector_store %arg4[%c27, %c0_17], %26 {strides = array<i32>} : memref<104x256xf32, #tpu.memory_space<vmem>>, vector<3x128xf32>,
    %28 = vector.extract_strided_slice %21 {offsets = [0, 3], sizes = [3, 128], strides = [1, 1]} : vector<3x135xf32> to vector<3x128xf32>
    %c39 = arith.constant 39 : index
    %c0_18 = arith.constant 0 : index
    %29 = vector.load %arg4[%c39, %c0_18] : memref<104x256xf32, #tpu.memory_space<vmem>>, vector<3x128xf32>
    tpu.vector_store %arg4[%c39, %c0_18], %28 {strides = array<i32>} : memref<104x256xf32, #tpu.memory_space<vmem>>, vector<3x128xf32>,
    %30 = vector.extract_strided_slice %21 {offsets = [0, 4], sizes = [3, 128], strides = [1, 1]} : vector<3x135xf32> to vector<3x128xf32>
    %c51 = arith.constant 51 : index
    %c0_19 = arith.constant 0 : index
    %31 = vector.load %arg4[%c51, %c0_19] : memref<104x256xf32, #tpu.memory_space<vmem>>, vector<3x128xf32>
    tpu.vector_store %arg4[%c51, %c0_19], %30 {strides = array<i32>} : memref<104x256xf32, #tpu.memory_space<vmem>>, vector<3x128xf32>,
    %32 = vector.extract_strided_slice %21 {offsets = [0, 5], sizes = [3, 128], strides = [1, 1]} : vector<3x135xf32> to vector<3x128xf32>
    %c63 = arith.constant 63 : index
    %c0_20 = arith.constant 0 : index
    %33 = vector.load %arg4[%c63, %c0_20] : memref<104x256xf32, #tpu.memory_space<vmem>>, vector<3x128xf32>
    tpu.vector_store %arg4[%c63, %c0_20], %32 {strides = array<i32>} : memref<104x256xf32, #tpu.memory_space<vmem>>, vector<3x128xf32>,
    %34 = vector.extract_strided_slice %21 {offsets = [0, 6], sizes = [3, 128], strides = [1, 1]} : vector<3x135xf32> to vector<3x128xf32>
    %c75 = arith.constant 75 : index
    %c0_21 = arith.constant 0 : index
    %35 = vector.load %arg4[%c75, %c0_21] : memref<104x256xf32, #tpu.memory_space<vmem>>, vector<3x128xf32>
    tpu.vector_store %arg4[%c75, %c0_21], %34 {strides = array<i32>} : memref<104x256xf32, #tpu.memory_space<vmem>>, vector<3x128xf32>,
    %36 = vector.extract_strided_slice %21 {offsets = [0, 7], sizes = [3, 128], strides = [1, 1]} : vector<3x135xf32> to vector<3x128xf32>
    %c87 = arith.constant 87 : index
    %c0_22 = arith.constant 0 : index
    %37 = vector.load %arg4[%c87, %c0_22] : memref<104x256xf32, #tpu.memory_space<vmem>>, vector<3x128xf32>
    tpu.vector_store %arg4[%c87, %c0_22], %36 {strides = array<i32>} : memref<104x256xf32, #tpu.memory_space<vmem>>, vector<3x128xf32>,
    %c0_23 = arith.constant 0 : index
    %c6 = arith.constant 6 : index
    %c0_24 = arith.constant 0 : index
    %38 = vector.load %arg1[%c0_23, %c6, %c0_24] : memref<1x24x135xf32, #tpu.memory_space<vmem>>, vector<1x3x135xf32>
    %39 = vector.shape_cast %38 : vector<1x3x135xf32> to vector<3x135xf32>
    %40 = vector.extract_strided_slice %39 {offsets = [0, 0], sizes = [3, 128], strides = [1, 1]} : vector<3x135xf32> to vector<3x128xf32>
    %c6_25 = arith.constant 6 : index
    %c0_26 = arith.constant 0 : index
    %41 = vector.load %arg4[%c6_25, %c0_26] : memref<104x256xf32, #tpu.memory_space<vmem>>, vector<3x128xf32>
    tpu.vector_store %arg4[%c6_25, %c0_26], %40 {strides = array<i32>} : memref<104x256xf32, #tpu.memory_space<vmem>>, vector<3x128xf32>,
    %42 = vector.extract_strided_slice %39 {offsets = [0, 1], sizes = [3, 128], strides = [1, 1]} : vector<3x135xf32> to vector<3x128xf32>
    %c18 = arith.constant 18 : index
    %c0_27 = arith.constant 0 : index
    %43 = vector.load %arg4[%c18, %c0_27] : memref<104x256xf32, #tpu.memory_space<vmem>>, vector<3x128xf32>
    tpu.vector_store %arg4[%c18, %c0_27], %42 {strides = array<i32>} : memref<104x256xf32, #tpu.memory_space<vmem>>, vector<3x128xf32>,
    %44 = vector.extract_strided_slice %39 {offsets = [0, 2], sizes = [3, 128], strides = [1, 1]} : vector<3x135xf32> to vector<3x128xf32>
    %c30 = arith.constant 30 : index
    %c0_28 = arith.constant 0 : index
    %45 = vector.load %arg4[%c30, %c0_28] : memref<104x256xf32, #tpu.memory_space<vmem>>, vector<3x128xf32>
    tpu.vector_store %arg4[%c30, %c0_28], %44 {strides = array<i32>} : memref<104x256xf32, #tpu.memory_space<vmem>>, vector<3x128xf32>,
    %46 = vector.extract_strided_slice %39 {offsets = [0, 3], sizes = [3, 128], strides = [1, 1]} : vector<3x135xf32> to vector<3x128xf32>
    %c42 = arith.constant 42 : index
    %c0_29 = arith.constant 0 : index
    %47 = vector.load %arg4[%c42, %c0_29] : memref<104x256xf32, #tpu.memory_space<vmem>>, vector<3x128xf32>
    tpu.vector_store %arg4[%c42, %c0_29], %46 {strides = array<i32>} : memref<104x256xf32, #tpu.memory_space<vmem>>, vector<3x128xf32>,
    %48 = vector.extract_strided_slice %39 {offsets = [0, 4], sizes = [3, 128], strides = [1, 1]} : vector<3x135xf32> to vector<3x128xf32>
    %c54 = arith.constant 54 : index
    %c0_30 = arith.constant 0 : index
    %49 = vector.load %arg4[%c54, %c0_30] : memref<104x256xf32, #tpu.memory_space<vmem>>, vector<3x128xf32>
    tpu.vector_store %arg4[%c54, %c0_30], %48 {strides = array<i32>} : memref<104x256xf32, #tpu.memory_space<vmem>>, vector<3x128xf32>,
    %50 = vector.extract_strided_slice %39 {offsets = [0, 5], sizes = [3, 128], strides = [1, 1]} : vector<3x135xf32> to vector<3x128xf32>
    %c66 = arith.constant 66 : index
    %c0_31 = arith.constant 0 : index
    %51 = vector.load %arg4[%c66, %c0_31] : memref<104x256xf32, #tpu.memory_space<vmem>>, vector<3x128xf32>
    tpu.vector_store %arg4[%c66, %c0_31], %50 {strides = array<i32>} : memref<104x256xf32, #tpu.memory_space<vmem>>, vector<3x128xf32>,
    %52 = vector.extract_strided_slice %39 {offsets = [0, 6], sizes = [3, 128], strides = [1, 1]} : vector<3x135xf32> to vector<3x128xf32>
    %c78 = arith.constant 78 : index
    %c0_32 = arith.constant 0 : index
    %53 = vector.load %arg4[%c78, %c0_32] : memref<104x256xf32, #tpu.memory_space<vmem>>, vector<3x128xf32>
    tpu.vector_store %arg4[%c78, %c0_32], %52 {strides = array<i32>} : memref<104x256xf32, #tpu.memory_space<vmem>>, vector<3x128xf32>,
    %54 = vector.extract_strided_slice %39 {offsets = [0, 7], sizes = [3, 128], strides = [1, 1]} : vector<3x135xf32> to vector<3x128xf32>
    %c90 = arith.constant 90 : index
    %c0_33 = arith.constant 0 : index
    %55 = vector.load %arg4[%c90, %c0_33] : memref<104x256xf32, #tpu.memory_space<vmem>>, vector<3x128xf32>
    tpu.vector_store %arg4[%c90, %c0_33], %54 {strides = array<i32>} : memref<104x256xf32, #tpu.memory_space<vmem>>, vector<3x128xf32>,
    %c0_34 = arith.constant 0 : index
    %c9 = arith.constant 9 : index
    %c0_35 = arith.constant 0 : index
    %56 = vector.load %arg1[%c0_34, %c9, %c0_35] : memref<1x24x135xf32, #tpu.memory_space<vmem>>, vector<1x3x135xf32>
    %57 = vector.shape_cast %56 : vector<1x3x135xf32> to vector<3x135xf32>
    %58 = vector.extract_strided_slice %57 {offsets = [0, 0], sizes = [3, 128], strides = [1, 1]} : vector<3x135xf32> to vector<3x128xf32>
    %c9_36 = arith.constant 9 : index
    %c0_37 = arith.constant 0 : index
    %59 = vector.load %arg4[%c9_36, %c0_37] : memref<104x256xf32, #tpu.memory_space<vmem>>, vector<3x128xf32>
    tpu.vector_store %arg4[%c9_36, %c0_37], %58 {strides = array<i32>} : memref<104x256xf32, #tpu.memory_space<vmem>>, vector<3x128xf32>,
    %60 = vector.extract_strided_slice %57 {offsets = [0, 1], sizes = [3, 128], strides = [1, 1]} : vector<3x135xf32> to vector<3x128xf32>
    %c21 = arith.constant 21 : index
    %c0_38 = arith.constant 0 : index
    %61 = vector.load %arg4[%c21, %c0_38] : memref<104x256xf32, #tpu.memory_space<vmem>>, vector<3x128xf32>
    tpu.vector_store %arg4[%c21, %c0_38], %60 {strides = array<i32>} : memref<104x256xf32, #tpu.memory_space<vmem>>, vector<3x128xf32>,
    %62 = vector.extract_strided_slice %57 {offsets = [0, 2], sizes = [3, 128], strides = [1, 1]} : vector<3x135xf32> to vector<3x128xf32>
    %c33 = arith.constant 33 : index
    %c0_39 = arith.constant 0 : index
    %63 = vector.load %arg4[%c33, %c0_39] : memref<104x256xf32, #tpu.memory_space<vmem>>, vector<3x128xf32>
    tpu.vector_store %arg4[%c33, %c0_39], %62 {strides = array<i32>} : memref<104x256xf32, #tpu.memory_space<vmem>>, vector<3x128xf32>,
    %64 = vector.extract_strided_slice %57 {offsets = [0, 3], sizes = [3, 128], strides = [1, 1]} : vector<3x135xf32> to vector<3x128xf32>
    %c45 = arith.constant 45 : index
    %c0_40 = arith.constant 0 : index
    %65 = vector.load %arg4[%c45, %c0_40] : memref<104x256xf32, #tpu.memory_space<vmem>>, vector<3x128xf32>
    tpu.vector_store %arg4[%c45, %c0_40], %64 {strides = array<i32>} : memref<104x256xf32, #tpu.memory_space<vmem>>, vector<3x128xf32>,
    %66 = vector.extract_strided_slice %57 {offsets = [0, 4], sizes = [3, 128], strides = [1, 1]} : vector<3x135xf32> to vector<3x128xf32>
    %c57 = arith.constant 57 : index
    %c0_41 = arith.constant 0 : index
    %67 = vector.load %arg4[%c57, %c0_41] : memref<104x256xf32, #tpu.memory_space<vmem>>, vector<3x128xf32>
    tpu.vector_store %arg4[%c57, %c0_41], %66 {strides = array<i32>} : memref<104x256xf32, #tpu.memory_space<vmem>>, vector<3x128xf32>,
    %68 = vector.extract_strided_slice %57 {offsets = [0, 5], sizes = [3, 128], strides = [1, 1]} : vector<3x135xf32> to vector<3x128xf32>
    %c69 = arith.constant 69 : index
    %c0_42 = arith.constant 0 : index
    %69 = vector.load %arg4[%c69, %c0_42] : memref<104x256xf32, #tpu.memory_space<vmem>>, vector<3x128xf32>
    tpu.vector_store %arg4[%c69, %c0_42], %68 {strides = array<i32>} : memref<104x256xf32, #tpu.memory_space<vmem>>, vector<3x128xf32>,
    %70 = vector.extract_strided_slice %57 {offsets = [0, 6], sizes = [3, 128], strides = [1, 1]} : vector<3x135xf32> to vector<3x128xf32>
    %c81 = arith.constant 81 : index
    %c0_43 = arith.constant 0 : index
    %71 = vector.load %arg4[%c81, %c0_43] : memref<104x256xf32, #tpu.memory_space<vmem>>, vector<3x128xf32>
    tpu.vector_store %arg4[%c81, %c0_43], %70 {strides = array<i32>} : memref<104x256xf32, #tpu.memory_space<vmem>>, vector<3x128xf32>,
    %72 = vector.extract_strided_slice %57 {offsets = [0, 7], sizes = [3, 128], strides = [1, 1]} : vector<3x135xf32> to vector<3x128xf32>
    %c93 = arith.constant 93 : index
    %c0_44 = arith.constant 0 : index
    %73 = vector.load %arg4[%c93, %c0_44] : memref<104x256xf32, #tpu.memory_space<vmem>>, vector<3x128xf32>
    tpu.vector_store %arg4[%c93, %c0_44], %72 {strides = array<i32>} : memref<104x256xf32, #tpu.memory_space<vmem>>, vector<3x128xf32>,
    %c0_45 = arith.constant 0 : index
    %c12_46 = arith.constant 12 : index
    %c0_47 = arith.constant 0 : index
    %74 = vector.load %arg1[%c0_45, %c12_46, %c0_47] : memref<1x24x135xf32, #tpu.memory_space<vmem>>, vector<1x3x135xf32>
    %75 = vector.shape_cast %74 : vector<1x3x135xf32> to vector<3x135xf32>
    %76 = vector.extract_strided_slice %75 {offsets = [0, 0], sizes = [3, 128], strides = [1, 1]} : vector<3x135xf32> to vector<3x128xf32>
    %c0_48 = arith.constant 0 : index
    %c128 = arith.constant 128 : index
    %77 = vector.load %arg4[%c0_48, %c128] : memref<104x256xf32, #tpu.memory_space<vmem>>, vector<3x128xf32>
    tpu.vector_store %arg4[%c0_48, %c128], %76 {strides = array<i32>} : memref<104x256xf32, #tpu.memory_space<vmem>>, vector<3x128xf32>,
    %78 = vector.extract_strided_slice %75 {offsets = [0, 1], sizes = [3, 128], strides = [1, 1]} : vector<3x135xf32> to vector<3x128xf32>
    %c12_49 = arith.constant 12 : index
    %c128_50 = arith.constant 128 : index
    %79 = vector.load %arg4[%c12_49, %c128_50] : memref<104x256xf32, #tpu.memory_space<vmem>>, vector<3x128xf32>
    tpu.vector_store %arg4[%c12_49, %c128_50], %78 {strides = array<i32>} : memref<104x256xf32, #tpu.memory_space<vmem>>, vector<3x128xf32>,
    %80 = vector.extract_strided_slice %75 {offsets = [0, 2], sizes = [3, 128], strides = [1, 1]} : vector<3x135xf32> to vector<3x128xf32>
    %c24_51 = arith.constant 24 : index
    %c128_52 = arith.constant 128 : index
    %81 = vector.load %arg4[%c24_51, %c128_52] : memref<104x256xf32, #tpu.memory_space<vmem>>, vector<3x128xf32>
    tpu.vector_store %arg4[%c24_51, %c128_52], %80 {strides = array<i32>} : memref<104x256xf32, #tpu.memory_space<vmem>>, vector<3x128xf32>,
    %82 = vector.extract_strided_slice %75 {offsets = [0, 3], sizes = [3, 128], strides = [1, 1]} : vector<3x135xf32> to vector<3x128xf32>
    %c36_53 = arith.constant 36 : index
    %c128_54 = arith.constant 128 : index
    %83 = vector.load %arg4[%c36_53, %c128_54] : memref<104x256xf32, #tpu.memory_space<vmem>>, vector<3x128xf32>
    tpu.vector_store %arg4[%c36_53, %c128_54], %82 {strides = array<i32>} : memref<104x256xf32, #tpu.memory_space<vmem>>, vector<3x128xf32>,
    %84 = vector.extract_strided_slice %75 {offsets = [0, 4], sizes = [3, 128], strides = [1, 1]} : vector<3x135xf32> to vector<3x128xf32>
    %c48_55 = arith.constant 48 : index
    %c128_56 = arith.constant 128 : index
    %85 = vector.load %arg4[%c48_55, %c128_56] : memref<104x256xf32, #tpu.memory_space<vmem>>, vector<3x128xf32>
    tpu.vector_store %arg4[%c48_55, %c128_56], %84 {strides = array<i32>} : memref<104x256xf32, #tpu.memory_space<vmem>>, vector<3x128xf32>,
    %86 = vector.extract_strided_slice %75 {offsets = [0, 5], sizes = [3, 128], strides = [1, 1]} : vector<3x135xf32> to vector<3x128xf32>
    %c60_57 = arith.constant 60 : index
    %c128_58 = arith.constant 128 : index
    %87 = vector.load %arg4[%c60_57, %c128_58] : memref<104x256xf32, #tpu.memory_space<vmem>>, vector<3x128xf32>
    tpu.vector_store %arg4[%c60_57, %c128_58], %86 {strides = array<i32>} : memref<104x256xf32, #tpu.memory_space<vmem>>, vector<3x128xf32>,
    %88 = vector.extract_strided_slice %75 {offsets = [0, 6], sizes = [3, 128], strides = [1, 1]} : vector<3x135xf32> to vector<3x128xf32>
    %c72_59 = arith.constant 72 : index
    %c128_60 = arith.constant 128 : index
    %89 = vector.load %arg4[%c72_59, %c128_60] : memref<104x256xf32, #tpu.memory_space<vmem>>, vector<3x128xf32>
    tpu.vector_store %arg4[%c72_59, %c128_60], %88 {strides = array<i32>} : memref<104x256xf32, #tpu.memory_space<vmem>>, vector<3x128xf32>,
    %90 = vector.extract_strided_slice %75 {offsets = [0, 7], sizes = [3, 128], strides = [1, 1]} : vector<3x135xf32> to vector<3x128xf32>
    %c84_61 = arith.constant 84 : index
    %c128_62 = arith.constant 128 : index
    %91 = vector.load %arg4[%c84_61, %c128_62] : memref<104x256xf32, #tpu.memory_space<vmem>>, vector<3x128xf32>
    tpu.vector_store %arg4[%c84_61, %c128_62], %90 {strides = array<i32>} : memref<104x256xf32, #tpu.memory_space<vmem>>, vector<3x128xf32>,
    %c0_63 = arith.constant 0 : index
    %c15_64 = arith.constant 15 : index
    %c0_65 = arith.constant 0 : index
    %92 = vector.load %arg1[%c0_63, %c15_64, %c0_65] : memref<1x24x135xf32, #tpu.memory_space<vmem>>, vector<1x3x135xf32>
    %93 = vector.shape_cast %92 : vector<1x3x135xf32> to vector<3x135xf32>
    %94 = vector.extract_strided_slice %93 {offsets = [0, 0], sizes = [3, 128], strides = [1, 1]} : vector<3x135xf32> to vector<3x128xf32>
    %c3_66 = arith.constant 3 : index
    %c128_67 = arith.constant 128 : index
    %95 = vector.load %arg4[%c3_66, %c128_67] : memref<104x256xf32, #tpu.memory_space<vmem>>, vector<3x128xf32>
    tpu.vector_store %arg4[%c3_66, %c128_67], %94 {strides = array<i32>} : memref<104x256xf32, #tpu.memory_space<vmem>>, vector<3x128xf32>,
    %96 = vector.extract_strided_slice %93 {offsets = [0, 1], sizes = [3, 128], strides = [1, 1]} : vector<3x135xf32> to vector<3x128xf32>
    %c15_68 = arith.constant 15 : index
    %c128_69 = arith.constant 128 : index
    %97 = vector.load %arg4[%c15_68, %c128_69] : memref<104x256xf32, #tpu.memory_space<vmem>>, vector<3x128xf32>
    tpu.vector_store %arg4[%c15_68, %c128_69], %96 {strides = array<i32>} : memref<104x256xf32, #tpu.memory_space<vmem>>, vector<3x128xf32>,
    %98 = vector.extract_strided_slice %93 {offsets = [0, 2], sizes = [3, 128], strides = [1, 1]} : vector<3x135xf32> to vector<3x128xf32>
    %c27_70 = arith.constant 27 : index
    %c128_71 = arith.constant 128 : index
    %99 = vector.load %arg4[%c27_70, %c128_71] : memref<104x256xf32, #tpu.memory_space<vmem>>, vector<3x128xf32>
    tpu.vector_store %arg4[%c27_70, %c128_71], %98 {strides = array<i32>} : memref<104x256xf32, #tpu.memory_space<vmem>>, vector<3x128xf32>,
    %100 = vector.extract_strided_slice %93 {offsets = [0, 3], sizes = [3, 128], strides = [1, 1]} : vector<3x135xf32> to vector<3x128xf32>
    %c39_72 = arith.constant 39 : index
    %c128_73 = arith.constant 128 : index
    %101 = vector.load %arg4[%c39_72, %c128_73] : memref<104x256xf32, #tpu.memory_space<vmem>>, vector<3x128xf32>
    tpu.vector_store %arg4[%c39_72, %c128_73], %100 {strides = array<i32>} : memref<104x256xf32, #tpu.memory_space<vmem>>, vector<3x128xf32>,
    %102 = vector.extract_strided_slice %93 {offsets = [0, 4], sizes = [3, 128], strides = [1, 1]} : vector<3x135xf32> to vector<3x128xf32>
    %c51_74 = arith.constant 51 : index
    %c128_75 = arith.constant 128 : index
    %103 = vector.load %arg4[%c51_74, %c128_75] : memref<104x256xf32, #tpu.memory_space<vmem>>, vector<3x128xf32>
    tpu.vector_store %arg4[%c51_74, %c128_75], %102 {strides = array<i32>} : memref<104x256xf32, #tpu.memory_space<vmem>>, vector<3x128xf32>,
    %104 = vector.extract_strided_slice %93 {offsets = [0, 5], sizes = [3, 128], strides = [1, 1]} : vector<3x135xf32> to vector<3x128xf32>
    %c63_76 = arith.constant 63 : index
    %c128_77 = arith.constant 128 : index
    %105 = vector.load %arg4[%c63_76, %c128_77] : memref<104x256xf32, #tpu.memory_space<vmem>>, vector<3x128xf32>
    tpu.vector_store %arg4[%c63_76, %c128_77], %104 {strides = array<i32>} : memref<104x256xf32, #tpu.memory_space<vmem>>, vector<3x128xf32>,
    %106 = vector.extract_strided_slice %93 {offsets = [0, 6], sizes = [3, 128], strides = [1, 1]} : vector<3x135xf32> to vector<3x128xf32>
    %c75_78 = arith.constant 75 : index
    %c128_79 = arith.constant 128 : index
    %107 = vector.load %arg4[%c75_78, %c128_79] : memref<104x256xf32, #tpu.memory_space<vmem>>, vector<3x128xf32>
    tpu.vector_store %arg4[%c75_78, %c128_79], %106 {strides = array<i32>} : memref<104x256xf32, #tpu.memory_space<vmem>>, vector<3x128xf32>,
    %108 = vector.extract_strided_slice %93 {offsets = [0, 7], sizes = [3, 128], strides = [1, 1]} : vector<3x135xf32> to vector<3x128xf32>
    %c87_80 = arith.constant 87 : index
    %c128_81 = arith.constant 128 : index
    %109 = vector.load %arg4[%c87_80, %c128_81] : memref<104x256xf32, #tpu.memory_space<vmem>>, vector<3x128xf32>
    tpu.vector_store %arg4[%c87_80, %c128_81], %108 {strides = array<i32>} : memref<104x256xf32, #tpu.memory_space<vmem>>, vector<3x128xf32>,
    %c0_82 = arith.constant 0 : index
    %c18_83 = arith.constant 18 : index
    %c0_84 = arith.constant 0 : index
    %110 = vector.load %arg1[%c0_82, %c18_83, %c0_84] : memref<1x24x135xf32, #tpu.memory_space<vmem>>, vector<1x3x135xf32>
    %111 = vector.shape_cast %110 : vector<1x3x135xf32> to vector<3x135xf32>
    %112 = vector.extract_strided_slice %111 {offsets = [0, 0], sizes = [3, 128], strides = [1, 1]} : vector<3x135xf32> to vector<3x128xf32>
    %c6_85 = arith.constant 6 : index
    %c128_86 = arith.constant 128 : index
    %113 = vector.load %arg4[%c6_85, %c128_86] : memref<104x256xf32, #tpu.memory_space<vmem>>, vector<3x128xf32>
    tpu.vector_store %arg4[%c6_85, %c128_86], %112 {strides = array<i32>} : memref<104x256xf32, #tpu.memory_space<vmem>>, vector<3x128xf32>,
    %114 = vector.extract_strided_slice %111 {offsets = [0, 1], sizes = [3, 128], strides = [1, 1]} : vector<3x135xf32> to vector<3x128xf32>
    %c18_87 = arith.constant 18 : index
    %c128_88 = arith.constant 128 : index
    %115 = vector.load %arg4[%c18_87, %c128_88] : memref<104x256xf32, #tpu.memory_space<vmem>>, vector<3x128xf32>
    tpu.vector_store %arg4[%c18_87, %c128_88], %114 {strides = array<i32>} : memref<104x256xf32, #tpu.memory_space<vmem>>, vector<3x128xf32>,
    %116 = vector.extract_strided_slice %111 {offsets = [0, 2], sizes = [3, 128], strides = [1, 1]} : vector<3x135xf32> to vector<3x128xf32>
    %c30_89 = arith.constant 30 : index
    %c128_90 = arith.constant 128 : index
    %117 = vector.load %arg4[%c30_89, %c128_90] : memref<104x256xf32, #tpu.memory_space<vmem>>, vector<3x128xf32>
    tpu.vector_store %arg4[%c30_89, %c128_90], %116 {strides = array<i32>} : memref<104x256xf32, #tpu.memory_space<vmem>>, vector<3x128xf32>,
    %118 = vector.extract_strided_slice %111 {offsets = [0, 3], sizes = [3, 128], strides = [1, 1]} : vector<3x135xf32> to vector<3x128xf32>
    %c42_91 = arith.constant 42 : index
    %c128_92 = arith.constant 128 : index
    %119 = vector.load %arg4[%c42_91, %c128_92] : memref<104x256xf32, #tpu.memory_space<vmem>>, vector<3x128xf32>
    tpu.vector_store %arg4[%c42_91, %c128_92], %118 {strides = array<i32>} : memref<104x256xf32, #tpu.memory_space<vmem>>, vector<3x128xf32>,
    %120 = vector.extract_strided_slice %111 {offsets = [0, 4], sizes = [3, 128], strides = [1, 1]} : vector<3x135xf32> to vector<3x128xf32>
    %c54_93 = arith.constant 54 : index
    %c128_94 = arith.constant 128 : index
    %121 = vector.load %arg4[%c54_93, %c128_94] : memref<104x256xf32, #tpu.memory_space<vmem>>, vector<3x128xf32>
    tpu.vector_store %arg4[%c54_93, %c128_94], %120 {strides = array<i32>} : memref<104x256xf32, #tpu.memory_space<vmem>>, vector<3x128xf32>,
    %122 = vector.extract_strided_slice %111 {offsets = [0, 5], sizes = [3, 128], strides = [1, 1]} : vector<3x135xf32> to vector<3x128xf32>
    %c66_95 = arith.constant 66 : index
    %c128_96 = arith.constant 128 : index
    %123 = vector.load %arg4[%c66_95, %c128_96] : memref<104x256xf32, #tpu.memory_space<vmem>>, vector<3x128xf32>
    tpu.vector_store %arg4[%c66_95, %c128_96], %122 {strides = array<i32>} : memref<104x256xf32, #tpu.memory_space<vmem>>, vector<3x128xf32>,
    %124 = vector.extract_strided_slice %111 {offsets = [0, 6], sizes = [3, 128], strides = [1, 1]} : vector<3x135xf32> to vector<3x128xf32>
    %c78_97 = arith.constant 78 : index
    %c128_98 = arith.constant 128 : index
    %125 = vector.load %arg4[%c78_97, %c128_98] : memref<104x256xf32, #tpu.memory_space<vmem>>, vector<3x128xf32>
    tpu.vector_store %arg4[%c78_97, %c128_98], %124 {strides = array<i32>} : memref<104x256xf32, #tpu.memory_space<vmem>>, vector<3x128xf32>,
    %126 = vector.extract_strided_slice %111 {offsets = [0, 7], sizes = [3, 128], strides = [1, 1]} : vector<3x135xf32> to vector<3x128xf32>
    %c90_99 = arith.constant 90 : index
    %c128_100 = arith.constant 128 : index
    %127 = vector.load %arg4[%c90_99, %c128_100] : memref<104x256xf32, #tpu.memory_space<vmem>>, vector<3x128xf32>
    tpu.vector_store %arg4[%c90_99, %c128_100], %126 {strides = array<i32>} : memref<104x256xf32, #tpu.memory_space<vmem>>, vector<3x128xf32>,
    %c0_101 = arith.constant 0 : index
    %c21_102 = arith.constant 21 : index
    %c0_103 = arith.constant 0 : index
    %128 = vector.load %arg1[%c0_101, %c21_102, %c0_103] : memref<1x24x135xf32, #tpu.memory_space<vmem>>, vector<1x3x135xf32>
    %129 = vector.shape_cast %128 : vector<1x3x135xf32> to vector<3x135xf32>
    %130 = vector.extract_strided_slice %129 {offsets = [0, 0], sizes = [3, 128], strides = [1, 1]} : vector<3x135xf32> to vector<3x128xf32>
    %c9_104 = arith.constant 9 : index
    %c128_105 = arith.constant 128 : index
    %131 = vector.load %arg4[%c9_104, %c128_105] : memref<104x256xf32, #tpu.memory_space<vmem>>, vector<3x128xf32>
    tpu.vector_store %arg4[%c9_104, %c128_105], %130 {strides = array<i32>} : memref<104x256xf32, #tpu.memory_space<vmem>>, vector<3x128xf32>,
    %132 = vector.extract_strided_slice %129 {offsets = [0, 1], sizes = [3, 128], strides = [1, 1]} : vector<3x135xf32> to vector<3x128xf32>
    %c21_106 = arith.constant 21 : index
    %c128_107 = arith.constant 128 : index
    %133 = vector.load %arg4[%c21_106, %c128_107] : memref<104x256xf32, #tpu.memory_space<vmem>>, vector<3x128xf32>
    tpu.vector_store %arg4[%c21_106, %c128_107], %132 {strides = array<i32>} : memref<104x256xf32, #tpu.memory_space<vmem>>, vector<3x128xf32>,
    %134 = vector.extract_strided_slice %129 {offsets = [0, 2], sizes = [3, 128], strides = [1, 1]} : vector<3x135xf32> to vector<3x128xf32>
    %c33_108 = arith.constant 33 : index
    %c128_109 = arith.constant 128 : index
    %135 = vector.load %arg4[%c33_108, %c128_109] : memref<104x256xf32, #tpu.memory_space<vmem>>, vector<3x128xf32>
    tpu.vector_store %arg4[%c33_108, %c128_109], %134 {strides = array<i32>} : memref<104x256xf32, #tpu.memory_space<vmem>>, vector<3x128xf32>,
    %136 = vector.extract_strided_slice %129 {offsets = [0, 3], sizes = [3, 128], strides = [1, 1]} : vector<3x135xf32> to vector<3x128xf32>
    %c45_110 = arith.constant 45 : index
    %c128_111 = arith.constant 128 : index
    %137 = vector.load %arg4[%c45_110, %c128_111] : memref<104x256xf32, #tpu.memory_space<vmem>>, vector<3x128xf32>
    tpu.vector_store %arg4[%c45_110, %c128_111], %136 {strides = array<i32>} : memref<104x256xf32, #tpu.memory_space<vmem>>, vector<3x128xf32>,
    %138 = vector.extract_strided_slice %129 {offsets = [0, 4], sizes = [3, 128], strides = [1, 1]} : vector<3x135xf32> to vector<3x128xf32>
    %c57_112 = arith.constant 57 : index
    %c128_113 = arith.constant 128 : index
    %139 = vector.load %arg4[%c57_112, %c128_113] : memref<104x256xf32, #tpu.memory_space<vmem>>, vector<3x128xf32>
    tpu.vector_store %arg4[%c57_112, %c128_113], %138 {strides = array<i32>} : memref<104x256xf32, #tpu.memory_space<vmem>>, vector<3x128xf32>,
    %140 = vector.extract_strided_slice %129 {offsets = [0, 5], sizes = [3, 128], strides = [1, 1]} : vector<3x135xf32> to vector<3x128xf32>
    %c69_114 = arith.constant 69 : index
    %c128_115 = arith.constant 128 : index
    %141 = vector.load %arg4[%c69_114, %c128_115] : memref<104x256xf32, #tpu.memory_space<vmem>>, vector<3x128xf32>
    tpu.vector_store %arg4[%c69_114, %c128_115], %140 {strides = array<i32>} : memref<104x256xf32, #tpu.memory_space<vmem>>, vector<3x128xf32>,
    %142 = vector.extract_strided_slice %129 {offsets = [0, 6], sizes = [3, 128], strides = [1, 1]} : vector<3x135xf32> to vector<3x128xf32>
    %c81_116 = arith.constant 81 : index
    %c128_117 = arith.constant 128 : index
    %143 = vector.load %arg4[%c81_116, %c128_117] : memref<104x256xf32, #tpu.memory_space<vmem>>, vector<3x128xf32>
    tpu.vector_store %arg4[%c81_116, %c128_117], %142 {strides = array<i32>} : memref<104x256xf32, #tpu.memory_space<vmem>>, vector<3x128xf32>,
    %144 = vector.extract_strided_slice %129 {offsets = [0, 7], sizes = [3, 128], strides = [1, 1]} : vector<3x135xf32> to vector<3x128xf32>
    %c93_118 = arith.constant 93 : index
    %c128_119 = arith.constant 128 : index
    %145 = vector.load %arg4[%c93_118, %c128_119] : memref<104x256xf32, #tpu.memory_space<vmem>>, vector<3x128xf32>
    tpu.vector_store %arg4[%c93_118, %c128_119], %144 {strides = array<i32>} : memref<104x256xf32, #tpu.memory_space<vmem>>, vector<3x128xf32>,
    %c0_120 = arith.constant 0 : index
    %c0_121 = arith.constant 0 : index
    %146 = vector.load %arg2[%c0_120, %c0_121] : memref<256x104xf32, #tpu.memory_space<vmem>>, vector<256x104xf32>
    %c0_122 = arith.constant 0 : index
    %c0_123 = arith.constant 0 : index
    %147 = vector.load %arg4[%c0_122, %c0_123] : memref<104x256xf32, #tpu.memory_space<vmem>>, vector<104x256xf32>
    %cst_124 = arith.constant dense<0.000000e+00> : vector<256x256xf32>
    %148 = tpu.matmul %146, %147, %cst_124 {dimension_numbers = #tpu.dot_dimension_numbers<[1], [0], [0], [1], [0, 0, 1, 1], [], []>} : vector<256x104xf32>, vector<104x256xf32>, vector<256x256xf32> -> vector<256x256xf32>
    %c0_125 = arith.constant 0 : index
    %c0_126 = arith.constant 0 : index
    %c0_127 = arith.constant 0 : index
    %149 = vector.load %arg3[%c0_125, %c0_126, %c0_127] : memref<1x256x256xf32, #tpu.memory_space<vmem>>, vector<1x256x256xf32>
    %150 = vector.shape_cast %149 : vector<1x256x256xf32> to vector<256x256xf32>
    %151 = vector.shape_cast %148 : vector<256x256xf32> to vector<1x256x256xf32>
    tpu.vector_store %arg3[%c0_125, %c0_126, %c0_127], %151 {strides = array<i32>} : memref<1x256x256xf32, #tpu.memory_space<vmem>>, vector<1x256x256xf32>,
    return
  }
  func.func @transform_0(%arg0: i32) -> (i32, i32, i32) {
    %c0_i32 = arith.constant 0 : i32
    %c0_i32_0 = arith.constant 0 : i32
    %c0_i32_1 = arith.constant 0 : i32
    return %arg0, %c0_i32, %c0_i32_0 : i32, i32, i32
  }
  func.func @transform_1(%arg0: i32) -> (i32, i32) {
    %c0_i32 = arith.constant 0 : i32
    %c0_i32_0 = arith.constant 0 : i32
    %c0_i32_1 = arith.constant 0 : i32
    return %c0_i32, %c0_i32_0 : i32, i32
  }
  func.func @transform_2(%arg0: i32) -> (i32, i32, i32) {
    %c0_i32 = arith.constant 0 : i32
    %c0_i32_0 = arith.constant 0 : i32
    %c0_i32_1 = arith.constant 0 : i32
    return %arg0, %c0_i32, %c0_i32_0 : i32, i32, i32
  }
}

</mosaic_0001>

<llo_original>
// kernel: cnn_spectrogram_forward.1
$region0: #{cnn_spectrogram_forward.1}
  #allocation0 [shape = 'u32[]', space=smem, size = 0x4, offset = 0x4, fixed_abs, tag = 'smem constant byte address 0x4 - core index']
  #allocation1 [shape = 'u32[72,128]{1,0:T(1,128)}', space=vmem, size = 0x9000, scoped, tag = 'internal scratch']
  #allocation2 [shape = 'f32[104,256]{1,0:T(8,128)}', space=vmem, size = 0x1a000, scoped, tag = 'scratch operand']
  %s0 = inlined_call_operand.vmem [shape: f32[2,24,135], index: 0, kind: input, shape index: {}]
  %s1 = inlined_call_operand.vmem [shape: f32[256,104], index: 1, kind: input, shape index: {}]
  %s2 = inlined_call_operand.vmem [shape: f32[2,256,256], index: 2, kind: output, shape index: {}]
  %s3 = sld [smem:[#allocation0]]
  $region41: #{cnn_spectrogram_forward.1} parent=0
    _
  %s5 = ssub.s32 1, %s3
  %s6 = scalar_select 0, %s5, %s3
  loop: start=0, step=1, limit=4
  $region2: #{cnn_spectrogram_forward.1} parent=0 // loop_pre_header
    _
  $region3: #{cnn_spectrogram_forward.1} parent=0 // loop_header
    %s8 = sphi 0, %s12
    %p9 = scmp.ge.s32.totalorder %s8, 4
    %s18 = sphi 0, %s20
    %s21 = sphi 0, %s18
    %s22 = sphi 0, %s21
    %s38 = sphi 0, %s22
    %s42 = sphi 0, %s42
    %s44 = sphi 0, %s42
    %s45 = sphi 0, %s44
    %s59 = sphi 0, %s45
    %s65 = sphi 0, %s67
    %s68 = sphi 0, %s65
    %s69 = sphi 0, %s68
    %s85 = sphi 0, %s69
  $region4: #{cnn_spectrogram_forward.1} parent=0 // loop_header_branch
    %11 = sbr.rel (%p9) target = $region8
  $region5: #{cnn_spectrogram_forward.1} parent=0 // loop_body
    %s13 = ssub.s32 %s8, 1
    %s14 = ssub.s32 %s8, 2
    %s15 = sadd.s32 %s8, 1
    %s16 = ssub.s32 %s8, %s15
    %p17 = scmp.eq.s32.totalorder %s16, 0
    %s19 = sadd.s32 %s18, 1
    %s20 = scalar_select %p17, %s18, %s19
    %p23 = pneg %p17
    %p24 = scmp.eq.s32.totalorder %s8, 1
    %p25 = por %p23, %p24
    %p26 = scmp.ne.s32.totalorder %s18, %s21
    %p27 = scmp.eq.s32.totalorder %s8, 0
    %p28 = por %p26, %p27
    %p29 = scmp.ne.s32.totalorder %s18, %s21
    %p30 = scmp.eq.s32.totalorder %s13, 1
    %p31 = por %p29, %p30
    %p32 = scmp.ne.s32.totalorder %s21, %s22
    %p33 = scmp.eq.s32.totalorder %s13, 0
    %p34 = por %p32, %p33
    %p35 = scmp.ne.s32.totalorder %s21, %s22
    %p36 = scmp.eq.s32.totalorder %s14, 1
    %p37 = por %p35, %p36
    %p39 = scmp.ne.s32.totalorder %s22, %s38
    %p40 = scmp.eq.s32.totalorder %s14, 0
    %p41 = por %p39, %p40
    %s43 = sadd.s32 %s42, 1
    %p46 = scmp.eq.s32.totalorder %s8, 1
    %p47 = scmp.ne.s32.totalorder %s42, %s44
    %p48 = scmp.eq.s32.totalorder %s8, 0
    %p49 = por %p47, %p48
    %p50 = scmp.ne.s32.totalorder %s42, %s44
    %p51 = scmp.eq.s32.totalorder %s13, 1
    %p52 = por %p50, %p51
    %p53 = scmp.ne.s32.totalorder %s44, %s45
    %p54 = scmp.eq.s32.totalorder %s13, 0
    %p55 = por %p53, %p54
    %p56 = scmp.ne.s32.totalorder %s44, %s45
    %p57 = scmp.eq.s32.totalorder %s14, 1
    %p58 = por %p56, %p57
    %p60 = scmp.ne.s32.totalorder %s45, %s59
    %p61 = scmp.eq.s32.totalorder %s14, 0
    %p62 = por %p60, %p61
    %s63 = ssub.s32 %s8, %s15
    %p64 = scmp.eq.s32.totalorder %s63, 0
    %s66 = sadd.s32 %s65, 1
    %s67 = scalar_select %p64, %s65, %s66
    %p70 = pneg %p64
    %p71 = scmp.eq.s32.totalorder %s8, 1
    %p72 = por %p70, %p71
    %p73 = scmp.ne.s32.totalorder %s65, %s68
    %p74 = scmp.eq.s32.totalorder %s8, 0
    %p75 = por %p73, %p74
    %p76 = scmp.ne.s32.totalorder %s65, %s68
    %p77 = scmp.eq.s32.totalorder %s13, 1
    %p78 = por %p76, %p77
    %p79 = scmp.ne.s32.totalorder %s68, %s69
    %p80 = scmp.eq.s32.totalorder %s13, 0
    %p81 = por %p79, %p80
    %p82 = scmp.ne.s32.totalorder %s68, %s69
    %p83 = scmp.eq.s32.totalorder %s14, 1
    %p84 = por %p82, %p83
    %p86 = scmp.ne.s32.totalorder %s69, %s85
    %p87 = scmp.eq.s32.totalorder %s14, 0
    %p88 = por %p86, %p87
    %p89 = scmp.le.s32.totalorder 1, %s8
    %p90 = scmp.lt.s32.totalorder %s8, 3
    %p91 = pnand %p89, %p90
    %p92 = pneg %p91
    // Predicated region
    $region9: #{cnn_spectrogram_forward.1} parent=5 // pred_check
      _
    $region10: #{cnn_spectrogram_forward.1} parent=5 // pred_check_branch
      %94 = sbr.rel (%p91) target = $region12
    $region11: #{cnn_spectrogram_forward.1} parent=5 // pred_region
      %s95 = ssub.s32 %s8, 1
      // Predicated region
      $region13: #{cnn_spectrogram_forward.1} parent=11 // pred_check
        %p96 = pneg %p55
      $region14: #{cnn_spectrogram_forward.1} parent=11 // pred_check_branch
        %98 = sbr.rel (%p96) target = $region16
      $region15: #{cnn_spectrogram_forward.1} parent=11 // pred_region
        _
      $region16: #{cnn_spectrogram_forward.1} parent=11 // pred_fallthru
        _
    $region12: #{cnn_spectrogram_forward.1} parent=5 // pred_fallthru
      _
    %p99 = scmp.lt.s32.totalorder %s8, 2
    // Predicated region
    $region17: #{cnn_spectrogram_forward.1} parent=5 // pred_check
      %p100 = pneg %p99
    $region18: #{cnn_spectrogram_forward.1} parent=5 // pred_check_branch
      %102 = sbr.rel (%p100) target = $region20
    $region19: #{cnn_spectrogram_forward.1} parent=5 // pred_region
      // Predicated region
      $region21: #{cnn_spectrogram_forward.1} parent=19 // pred_check
        %p103 = pneg %p28
      $region22: #{cnn_spectrogram_forward.1} parent=19 // pred_check_branch
        %105 = sbr.rel (%p103) target = $region24
      $region23: #{cnn_spectrogram_forward.1} parent=19 // pred_region
        %p106 = scmp.lt.s32.totalorder %s8, 1
        %s107 = scalar_select %p106, %s8, 1
        %s108 = smul.addr %s107, 6
        %s109 = smul.addr %s108, 8
        %s110 = scalar_lea.vmem %s0, %s109
      $region24: #{cnn_spectrogram_forward.1} parent=19 // pred_fallthru
        _
    $region20: #{cnn_spectrogram_forward.1} parent=5 // pred_fallthru
      _
    %p111 = scmp.le.s32.totalorder 1, %s8
    %p112 = scmp.lt.s32.totalorder %s8, 3
    %p113 = pnand %p111, %p112
    %p114 = pneg %p113
    // Predicated region
    $region25: #{cnn_spectrogram_forward.1} parent=5 // pred_check
      _
    $region26: #{cnn_spectrogram_forward.1} parent=5 // pred_check_branch
      %116 = sbr.rel (%p113) target = $region28
    $region27: #{cnn_spectrogram_forward.1} parent=5 // pred_region
      %s117 = ssub.s32 %s8, 1
      %p118 = scmp.lt.s32.totalorder %s13, 1
      %s119 = scalar_select %p118, %s13, 1
      %s120 = smul.addr %s119, 6
      %s121 = smul.addr %s120, 8
      %s122 = scalar_lea.vmem %s0, %s121
      %p123 = pneg %p34
      %p124 = pneg %p31
      %p125 = pneg %p55
      %p126 = pneg %p52
      %p127 = pneg %p81
      %p128 = pneg %p78
      %p129 = scmp.lt.s32.totalorder %s13, 1
      %s130 = scalar_select %p129, %s13, 1
      %s131 = smul.addr %s130, 64
      %s132 = smul.addr %s131, 8
      %s133 = scalar_lea.vmem %s2, %s132
      %p134 = scmp.lt.s32.totalorder %s13, 1
      %s135 = scalar_select %p134, %s13, 1
      %s136 = smul.addr %s135, 6
      %s137 = smul.addr %s136, 8
      %s138 = scalar_lea.vmem %s0, %s137
      %p139 = scmp.lt.s32.totalorder %s13, 1
      %s140 = scalar_select %p139, %s13, 1
      %s141 = smul.addr %s140, 64
      %s142 = smul.addr %s141, 8
      %s143 = scalar_lea.vmem %s2, %s142
      %144 = vst [vmem:[#allocation2 + $0xc0] sm:$0xff] 1.0
      %145 = vst [vmem:[#allocation2 + $0xc8] sm:$0xff] 1.0
      %v146 = vld [vmem:[%s138] sm:$0x7]
      %v147 = vld [vmem:[%s138 + $0x8] sm:$0x7]
      %148 = vst [vmem:[#allocation2] sm:$0x7] %v146
      %v151 = vrot.slane %v146, 4
      %v152 = vrot.slane %v147, 4
      %153 = vrot.lane.b32.xlu0 %v151, 127
      %v154 = vpop.permute.xlu0 %153
      %155 = vrot.lane.b32.xlu0 %v152, 127
      %v156 = vpop.permute.xlu0 %155
      %vm157 = vcmask 1039360
      %v158 = vsel %vm157, %v154, %v156
      %160 = vst [vmem:[#allocation2 + $0x10] sm:$0x70] %v158
      %161 = vrot.lane.b32.xlu0 %v146, 126
      %v162 = vpop.permute.xlu0 %161
      %163 = vrot.lane.b32.xlu0 %v147, 126
      %v164 = vpop.permute.xlu0 %163
      %vm165 = vcmask 1031168
      %v166 = vsel %vm165, %v162, %v164
      %168 = vst [vmem:[#allocation2 + $0x30] sm:$0x7] %v166
      %169 = vrot.lane.b32.xlu0 %v151, 125
      %v170 = vpop.permute.xlu0 %169
      %171 = vrot.lane.b32.xlu0 %v152, 125
      %v172 = vpop.permute.xlu0 %171
      %vm173 = vcmask 1022976
      %v174 = vsel %vm173, %v170, %v172
      %176 = vst [vmem:[#allocation2 + $0x40] sm:$0x70] %v174
      %177 = vrot.lane.b32.xlu0 %v146, 124
      %v178 = vpop.permute.xlu0 %177
      %179 = vrot.lane.b32.xlu0 %v147, 124
      %v180 = vpop.permute.xlu0 %179
      %vm181 = vcmask 1014784
      %v182 = vsel %vm181, %v178, %v180
      %184 = vst [vmem:[#allocation2 + $0x60] sm:$0x7] %v182
      %185 = vrot.lane.b32.xlu0 %v151, 123
      %v186 = vpop.permute.xlu0 %185
      %187 = vrot.lane.b32.xlu0 %v152, 123
      %v188 = vpop.permute.xlu0 %187
      %vm189 = vcmask 1006592
      %v190 = vsel %vm189, %v186, %v188
      %192 = vst [vmem:[#allocation2 + $0x70] sm:$0x70] %v190
      %193 = vrot.lane.b32.xlu0 %v146, 122
      %v194 = vpop.permute.xlu0 %193
      %195 = vrot.lane.b32.xlu0 %v147, 122
      %v196 = vpop.permute.xlu0 %195
      %vm197 = vcmask 998400
      %v198 = vsel %vm197, %v194, %v196
      %200 = vst [vmem:[#allocation2 + $0x90] sm:$0x7] %v198
      %201 = vrot.lane.b32.xlu0 %v151, 121
      %v202 = vpop.permute.xlu0 %201
      %203 = vrot.lane.b32.xlu0 %v152, 121
      %v204 = vpop.permute.xlu0 %203
      %vm205 = vcmask 990208
      %v206 = vsel %vm205, %v202, %v204
      %208 = vst [vmem:[#allocation2 + $0xa0] sm:$0x70] %v206
      %v209 = vld [vmem:[%s138] sm:$0x38]
      %v210 = vld [vmem:[%s138 + $0x8] sm:$0x38]
      %211 = vst [vmem:[#allocation2] sm:$0x38] %v209
      %v214 = vrot.slane %v209, 4
      %v215 = vrot.slane %v210, 4
      %216 = vrot.lane.b32.xlu0 %v214, 127
      %v217 = vpop.permute.xlu0 %216
      %218 = vrot.lane.b32.xlu0 %v215, 127
      %v219 = vpop.permute.xlu0 %218
      %v220 = vsel %vm157, %v217, %v219
      %222 = vst [vmem:[#allocation2 + $0x10] sm:$0x80] %v220
      %223 = vst [vmem:[#allocation2 + $0x20] sm:$0x3] %v220
      %224 = vrot.lane.b32.xlu0 %v209, 126
      %v225 = vpop.permute.xlu0 %224
      %226 = vrot.lane.b32.xlu0 %v210, 126
      %v227 = vpop.permute.xlu0 %226
      %v228 = vsel %vm165, %v225, %v227
      %230 = vst [vmem:[#allocation2 + $0x30] sm:$0x38] %v228
      %231 = vrot.lane.b32.xlu0 %v214, 125
      %v232 = vpop.permute.xlu0 %231
      %233 = vrot.lane.b32.xlu0 %v215, 125
      %v234 = vpop.permute.xlu0 %233
      %v235 = vsel %vm173, %v232, %v234
      %237 = vst [vmem:[#allocation2 + $0x40] sm:$0x80] %v235
      %238 = vst [vmem:[#allocation2 + $0x50] sm:$0x3] %v235
      %239 = vrot.lane.b32.xlu0 %v209, 124
      %v240 = vpop.permute.xlu0 %239
      %241 = vrot.lane.b32.xlu0 %v210, 124
      %v242 = vpop.permute.xlu0 %241
      %v243 = vsel %vm181, %v240, %v242
      %245 = vst [vmem:[#allocation2 + $0x60] sm:$0x38] %v243
      %246 = vrot.lane.b32.xlu0 %v214, 123
      %v247 = vpop.permute.xlu0 %246
      %248 = vrot.lane.b32.xlu0 %v215, 123
      %v249 = vpop.permute.xlu0 %248
      %v250 = vsel %vm189, %v247, %v249
      %252 = vst [vmem:[#allocation2 + $0x70] sm:$0x80] %v250
      %253 = vst [vmem:[#allocation2 + $0x80] sm:$0x3] %v250
      %254 = vrot.lane.b32.xlu0 %v209, 122
      %v255 = vpop.permute.xlu0 %254
      %256 = vrot.lane.b32.xlu0 %v210, 122
      %v257 = vpop.permute.xlu0 %256
      %v258 = vsel %vm197, %v255, %v257
      %260 = vst [vmem:[#allocation2 + $0x90] sm:$0x38] %v258
      %261 = vrot.lane.b32.xlu0 %v214, 121
      %v262 = vpop.permute.xlu0 %261
      %263 = vrot.lane.b32.xlu0 %v215, 121
      %v264 = vpop.permute.xlu0 %263
      %v265 = vsel %vm205, %v262, %v264
      %267 = vst [vmem:[#allocation2 + $0xa0] sm:$0x80] %v265
      %268 = vst [vmem:[#allocation2 + $0xb0] sm:$0x3] %v265
      %v269 = vld [vmem:[%s138] sm:$0xc0]
      %v270 = vld [vmem:[%s138 + $0x8] sm:$0xc0]
      %v271 = vld [vmem:[%s138 + $0x10] sm:$0x1]
      %v272 = vld [vmem:[%s138 + $0x18] sm:$0x1]
      %273 = vst [vmem:[#allocation2] sm:$0xc0] %v269
      %274 = vst [vmem:[#allocation2 + $0x10] sm:$0x1] %v271
      %vm279 = vcmask 1043456
      %v280 = vrot.slane %v269, 4
      %v281 = vrot.slane %v271, 4
      %v282 = vsel %vm279, %v280, %v281
      %v283 = vrot.slane %v270, 4
      %v284 = vrot.slane %v272, 4
      %v285 = vsel %vm279, %v283, %v284
      %286 = vrot.lane.b32.xlu0 %v282, 127
      %v287 = vpop.permute.xlu0 %286
      %288 = vrot.lane.b32.xlu0 %v285, 127
      %v289 = vpop.permute.xlu0 %288
      %v290 = vsel %vm157, %v287, %v289
      %292 = vst [vmem:[#allocation2 + $0x20] sm:$0x1c] %v290
      %293 = vrot.lane.b32.xlu0 %v269, 126
      %v294 = vpop.permute.xlu0 %293
      %295 = vrot.lane.b32.xlu0 %v270, 126
      %v296 = vpop.permute.xlu0 %295
      %297 = vrot.lane.b32.xlu0 %v271, 126
      %v298 = vpop.permute.xlu0 %297
      %299 = vrot.lane.b32.xlu0 %v272, 126
      %v300 = vpop.permute.xlu0 %299
      %v301 = vsel %vm165, %v294, %v296
      %v302 = vsel %vm165, %v298, %v300
      %305 = vst [vmem:[#allocation2 + $0x30] sm:$0xc0] %v301
      %306 = vst [vmem:[#allocation2 + $0x40] sm:$0x1] %v302
      %307 = vrot.lane.b32.xlu0 %v282, 125
      %v308 = vpop.permute.xlu0 %307
      %309 = vrot.lane.b32.xlu0 %v285, 125
      %v310 = vpop.permute.xlu0 %309
      %v311 = vsel %vm173, %v308, %v310
      %313 = vst [vmem:[#allocation2 + $0x50] sm:$0x1c] %v311
      %314 = vrot.lane.b32.xlu0 %v269, 124
      %v315 = vpop.permute.xlu0 %314
      %316 = vrot.lane.b32.xlu0 %v270, 124
      %v317 = vpop.permute.xlu0 %316
      %318 = vrot.lane.b32.xlu0 %v271, 124
      %v319 = vpop.permute.xlu0 %318
      %320 = vrot.lane.b32.xlu0 %v272, 124
      %v321 = vpop.permute.xlu0 %320
      %v322 = vsel %vm181, %v315, %v317
      %v323 = vsel %vm181, %v319, %v321
      %326 = vst [vmem:[#allocation2 + $0x60] sm:$0xc0] %v322
      %327 = vst [vmem:[#allocation2 + $0x70] sm:$0x1] %v323
      %328 = vrot.lane.b32.xlu0 %v282, 123
      %v329 = vpop.permute.xlu0 %328
      %330 = vrot.lane.b32.xlu0 %v285, 123
      %v331 = vpop.permute.xlu0 %330
      %v332 = vsel %vm189, %v329, %v331
      %334 = vst [vmem:[#allocation2 + $0x80] sm:$0x1c] %v332
      %335 = vrot.lane.b32.xlu0 %v269, 122
      %v336 = vpop.permute.xlu0 %335
      %337 = vrot.lane.b32.xlu0 %v270, 122
      %v338 = vpop.permute.xlu0 %337
      %339 = vrot.lane.b32.xlu0 %v271, 122
      %v340 = vpop.permute.xlu0 %339
      %341 = vrot.lane.b32.xlu0 %v272, 122
      %v342 = vpop.permute.xlu0 %341
      %v343 = vsel %vm197, %v336, %v338
      %v344 = vsel %vm197, %v340, %v342
      %347 = vst [vmem:[#allocation2 + $0x90] sm:$0xc0] %v343
      %348 = vst [vmem:[#allocation2 + $0xa0] sm:$0x1] %v344
      %349 = vrot.lane.b32.xlu0 %v282, 121
      %v350 = vpop.permute.xlu0 %349
      %351 = vrot.lane.b32.xlu0 %v285, 121
      %v352 = vpop.permute.xlu0 %351
      %v353 = vsel %vm205, %v350, %v352
      %355 = vst [vmem:[#allocation2 + $0xb0] sm:$0x1c] %v353
      %v356 = vld [vmem:[%s138 + $0x10] sm:$0xe]
      %v357 = vld [vmem:[%s138 + $0x18] sm:$0xe]
      %358 = vst [vmem:[#allocation2 + $0x10] sm:$0xe] %v356
      %v361 = vrot.slane %v356, 4
      %v362 = vrot.slane %v357, 4
      %363 = vrot.lane.b32.xlu0 %v361, 127
      %v364 = vpop.permute.xlu0 %363
      %365 = vrot.lane.b32.xlu0 %v362, 127
      %v366 = vpop.permute.xlu0 %365
      %v367 = vsel %vm157, %v364, %v366
      %369 = vst [vmem:[#allocation2 + $0x20] sm:$0xe0] %v367
      %370 = vrot.lane.b32.xlu0 %v356, 126
      %v371 = vpop.permute.xlu0 %370
      %372 = vrot.lane.b32.xlu0 %v357, 126
      %v373 = vpop.permute.xlu0 %372
      %v374 = vsel %vm165, %v371, %v373
      %376 = vst [vmem:[#allocation2 + $0x40] sm:$0xe] %v374
      %377 = vrot.lane.b32.xlu0 %v361, 125
      %v378 = vpop.permute.xlu0 %377
      %379 = vrot.lane.b32.xlu0 %v362, 125
      %v380 = vpop.permute.xlu0 %379
      %v381 = vsel %vm173, %v378, %v380
      %383 = vst [vmem:[#allocation2 + $0x50] sm:$0xe0] %v381
      %384 = vrot.lane.b32.xlu0 %v356, 124
      %v385 = vpop.permute.xlu0 %384
      %386 = vrot.lane.b32.xlu0 %v357, 124
      %v387 = vpop.permute.xlu0 %386
      %v388 = vsel %vm181, %v385, %v387
      %390 = vst [vmem:[#allocation2 + $0x70] sm:$0xe] %v388
      %391 = vrot.lane.b32.xlu0 %v361, 123
      %v392 = vpop.permute.xlu0 %391
      %393 = vrot.lane.b32.xlu0 %v362, 123
      %v394 = vpop.permute.xlu0 %393
      %v395 = vsel %vm189, %v392, %v394
      %397 = vst [vmem:[#allocation2 + $0x80] sm:$0xe0] %v395
      %398 = vrot.lane.b32.xlu0 %v356, 122
      %v399 = vpop.permute.xlu0 %398
      %400 = vrot.lane.b32.xlu0 %v357, 122
      %v401 = vpop.permute.xlu0 %400
      %v402 = vsel %vm197, %v399, %v401
      %404 = vst [vmem:[#allocation2 + $0xa0] sm:$0xe] %v402
      %405 = vrot.lane.b32.xlu0 %v361, 121
      %v406 = vpop.permute.xlu0 %405
      %407 = vrot.lane.b32.xlu0 %v362, 121
      %v408 = vpop.permute.xlu0 %407
      %v409 = vsel %vm205, %v406, %v408
      %411 = vst [vmem:[#allocation2 + $0xb0] sm:$0xe0] %v409
      %v412 = vld [vmem:[%s138 + $0x10] sm:$0x70]
      %v413 = vld [vmem:[%s138 + $0x18] sm:$0x70]
      %v415 = vrot.slane %v412, 4
      %417 = vst [vmem:[#allocation2 + $0x8] sm:$0x7] %v415
      %419 = vrot.lane.b32.xlu0 %v412, 127
      %v420 = vpop.permute.xlu0 %419
      %421 = vrot.lane.b32.xlu0 %v413, 127
      %v422 = vpop.permute.xlu0 %421
      %v423 = vsel %vm157, %v420, %v422
      %425 = vst [vmem:[#allocation2 + $0x18] sm:$0x70] %v423
      %v426 = vrot.slane %v413, 4
      %427 = vrot.lane.b32.xlu0 %v415, 126
      %v428 = vpop.permute.xlu0 %427
      %429 = vrot.lane.b32.xlu0 %v426, 126
      %v430 = vpop.permute.xlu0 %429
      %v431 = vsel %vm165, %v428, %v430
      %433 = vst [vmem:[#allocation2 + $0x38] sm:$0x7] %v431
      %434 = vrot.lane.b32.xlu0 %v412, 125
      %v435 = vpop.permute.xlu0 %434
      %436 = vrot.lane.b32.xlu0 %v413, 125
      %v437 = vpop.permute.xlu0 %436
      %v438 = vsel %vm173, %v435, %v437
      %440 = vst [vmem:[#allocation2 + $0x48] sm:$0x70] %v438
      %441 = vrot.lane.b32.xlu0 %v415, 124
      %v442 = vpop.permute.xlu0 %441
      %443 = vrot.lane.b32.xlu0 %v426, 124
      %v444 = vpop.permute.xlu0 %443
      %v445 = vsel %vm181, %v442, %v444
      %447 = vst [vmem:[#allocation2 + $0x68] sm:$0x7] %v445
      %448 = vrot.lane.b32.xlu0 %v412, 123
      %v449 = vpop.permute.xlu0 %448
      %450 = vrot.lane.b32.xlu0 %v413, 123
      %v451 = vpop.permute.xlu0 %450
      %v452 = vsel %vm189, %v449, %v451
      %454 = vst [vmem:[#allocation2 + $0x78] sm:$0x70] %v452
      %455 = vrot.lane.b32.xlu0 %v415, 122
      %v456 = vpop.permute.xlu0 %455
      %457 = vrot.lane.b32.xlu0 %v426, 122
      %v458 = vpop.permute.xlu0 %457
      %v459 = vsel %vm197, %v456, %v458
      %461 = vst [vmem:[#allocation2 + $0x98] sm:$0x7] %v459
      %462 = vrot.lane.b32.xlu0 %v412, 121
      %v463 = vpop.permute.xlu0 %462
      %464 = vrot.lane.b32.xlu0 %v413, 121
      %v465 = vpop.permute.xlu0 %464
      %v466 = vsel %vm205, %v463, %v465
      %468 = vst [vmem:[#allocation2 + $0xa8] sm:$0x70] %v466
      %v469 = vld [vmem:[%s138 + $0x10] sm:$0x80]
      %v470 = vld [vmem:[%s138 + $0x18] sm:$0x80]
      %v471 = vld [vmem:[%s138 + $0x20] sm:$0x3]
      %v472 = vld [vmem:[%s138 + $0x28] sm:$0x3]
      %v475 = vrot.slane %v469, 4
      %v476 = vrot.slane %v471, 4
      %v477 = vsel %vm279, %v475, %v476
      %479 = vst [vmem:[#allocation2 + $0x8] sm:$0x38] %v477
      %482 = vrot.lane.b32.xlu0 %v469, 127
      %v483 = vpop.permute.xlu0 %482
      %484 = vrot.lane.b32.xlu0 %v470, 127
      %v485 = vpop.permute.xlu0 %484
      %486 = vrot.lane.b32.xlu0 %v471, 127
      %v487 = vpop.permute.xlu0 %486
      %488 = vrot.lane.b32.xlu0 %v472, 127
      %v489 = vpop.permute.xlu0 %488
      %v490 = vsel %vm157, %v483, %v485
      %v491 = vsel %vm157, %v487, %v489
      %494 = vst [vmem:[#allocation2 + $0x18] sm:$0x80] %v490
      %495 = vst [vmem:[#allocation2 + $0x28] sm:$0x3] %v491
      %v496 = vrot.slane %v470, 4
      %v497 = vrot.slane %v472, 4
      %v498 = vsel %vm279, %v496, %v497
      %499 = vrot.lane.b32.xlu0 %v477, 126
      %v500 = vpop.permute.xlu0 %499
      %501 = vrot.lane.b32.xlu0 %v498, 126
      %v502 = vpop.permute.xlu0 %501
      %v503 = vsel %vm165, %v500, %v502
      %505 = vst [vmem:[#allocation2 + $0x38] sm:$0x38] %v503
      %506 = vrot.lane.b32.xlu0 %v469, 125
      %v507 = vpop.permute.xlu0 %506
      %508 = vrot.lane.b32.xlu0 %v470, 125
      %v509 = vpop.permute.xlu0 %508
      %510 = vrot.lane.b32.xlu0 %v471, 125
      %v511 = vpop.permute.xlu0 %510
      %512 = vrot.lane.b32.xlu0 %v472, 125
      %v513 = vpop.permute.xlu0 %512
      %v514 = vsel %vm173, %v507, %v509
      %v515 = vsel %vm173, %v511, %v513
      %518 = vst [vmem:[#allocation2 + $0x48] sm:$0x80] %v514
      %519 = vst [vmem:[#allocation2 + $0x58] sm:$0x3] %v515
      %520 = vrot.lane.b32.xlu0 %v477, 124
      %v521 = vpop.permute.xlu0 %520
      %522 = vrot.lane.b32.xlu0 %v498, 124
      %v523 = vpop.permute.xlu0 %522
      %v524 = vsel %vm181, %v521, %v523
      %526 = vst [vmem:[#allocation2 + $0x68] sm:$0x38] %v524
      %527 = vrot.lane.b32.xlu0 %v469, 123
      %v528 = vpop.permute.xlu0 %527
      %529 = vrot.lane.b32.xlu0 %v470, 123
      %v530 = vpop.permute.xlu0 %529
      %531 = vrot.lane.b32.xlu0 %v471, 123
      %v532 = vpop.permute.xlu0 %531
      %533 = vrot.lane.b32.xlu0 %v472, 123
      %v534 = vpop.permute.xlu0 %533
      %v535 = vsel %vm189, %v528, %v530
      %v536 = vsel %vm189, %v532, %v534
      %539 = vst [vmem:[#allocation2 + $0x78] sm:$0x80] %v535
      %540 = vst [vmem:[#allocation2 + $0x88] sm:$0x3] %v536
      %541 = vrot.lane.b32.xlu0 %v477, 122
      %v542 = vpop.permute.xlu0 %541
      %543 = vrot.lane.b32.xlu0 %v498, 122
      %v544 = vpop.permute.xlu0 %543
      %v545 = vsel %vm197, %v542, %v544
      %547 = vst [vmem:[#allocation2 + $0x98] sm:$0x38] %v545
      %548 = vrot.lane.b32.xlu0 %v469, 121
      %v549 = vpop.permute.xlu0 %548
      %550 = vrot.lane.b32.xlu0 %v470, 121
      %v551 = vpop.permute.xlu0 %550
      %552 = vrot.lane.b32.xlu0 %v471, 121
      %v553 = vpop.permute.xlu0 %552
      %554 = vrot.lane.b32.xlu0 %v472, 121
      %v555 = vpop.permute.xlu0 %554
      %v556 = vsel %vm205, %v549, %v551
      %v557 = vsel %vm205, %v553, %v555
      %560 = vst [vmem:[#allocation2 + $0xa8] sm:$0x80] %v556
      %561 = vst [vmem:[#allocation2 + $0xb8] sm:$0x3] %v557
      %v562 = vld [vmem:[%s138 + $0x20] sm:$0x1c]
      %v563 = vld [vmem:[%s138 + $0x28] sm:$0x1c]
      %v565 = vrot.slane %v562, 4
      %567 = vst [vmem:[#allocation2 + $0x8] sm:$0xc0] %v565
      %568 = vst [vmem:[#allocation2 + $0x18] sm:$0x1] %v565
      %570 = vrot.lane.b32.xlu0 %v562, 127
      %v571 = vpop.permute.xlu0 %570
      %572 = vrot.lane.b32.xlu0 %v563, 127
      %v573 = vpop.permute.xlu0 %572
      %v574 = vsel %vm157, %v571, %v573
      %576 = vst [vmem:[#allocation2 + $0x28] sm:$0x1c] %v574
      %v577 = vrot.slane %v563, 4
      %578 = vrot.lane.b32.xlu0 %v565, 126
      %v579 = vpop.permute.xlu0 %578
      %580 = vrot.lane.b32.xlu0 %v577, 126
      %v581 = vpop.permute.xlu0 %580
      %v582 = vsel %vm165, %v579, %v581
      %584 = vst [vmem:[#allocation2 + $0x38] sm:$0xc0] %v582
      %585 = vst [vmem:[#allocation2 + $0x48] sm:$0x1] %v582
      %586 = vrot.lane.b32.xlu0 %v562, 125
      %v587 = vpop.permute.xlu0 %586
      %588 = vrot.lane.b32.xlu0 %v563, 125
      %v589 = vpop.permute.xlu0 %588
      %v590 = vsel %vm173, %v587, %v589
      %592 = vst [vmem:[#allocation2 + $0x58] sm:$0x1c] %v590
      %593 = vrot.lane.b32.xlu0 %v565, 124
      %v594 = vpop.permute.xlu0 %593
      %595 = vrot.lane.b32.xlu0 %v577, 124
      %v596 = vpop.permute.xlu0 %595
      %v597 = vsel %vm181, %v594, %v596
      %599 = vst [vmem:[#allocation2 + $0x68] sm:$0xc0] %v597
      %600 = vst [vmem:[#allocation2 + $0x78] sm:$0x1] %v597
      %601 = vrot.lane.b32.xlu0 %v562, 123
      %v602 = vpop.permute.xlu0 %601
      %603 = vrot.lane.b32.xlu0 %v563, 123
      %v604 = vpop.permute.xlu0 %603
      %v605 = vsel %vm189, %v602, %v604
      %607 = vst [vmem:[#allocation2 + $0x88] sm:$0x1c] %v605
      %608 = vrot.lane.b32.xlu0 %v565, 122
      %v609 = vpop.permute.xlu0 %608
      %610 = vrot.lane.b32.xlu0 %v577, 122
      %v611 = vpop.permute.xlu0 %610
      %v612 = vsel %vm197, %v609, %v611
      %614 = vst [vmem:[#allocation2 + $0x98] sm:$0xc0] %v612
      %615 = vst [vmem:[#allocation2 + $0xa8] sm:$0x1] %v612
      %616 = vrot.lane.b32.xlu0 %v562, 121
      %v617 = vpop.permute.xlu0 %616
      %618 = vrot.lane.b32.xlu0 %v563, 121
      %v619 = vpop.permute.xlu0 %618
      %v620 = vsel %vm205, %v617, %v619
      %622 = vst [vmem:[#allocation2 + $0xb8] sm:$0x1c] %v620
      %v623 = vld [vmem:[%s138 + $0x20] sm:$0xe0]
      %v624 = vld [vmem:[%s138 + $0x28] sm:$0xe0]
      %v626 = vrot.slane %v623, 4
      %628 = vst [vmem:[#allocation2 + $0x18] sm:$0xe] %v626
      %630 = vrot.lane.b32.xlu0 %v623, 127
      %v631 = vpop.permute.xlu0 %630
      %632 = vrot.lane.b32.xlu0 %v624, 127
      %v633 = vpop.permute.xlu0 %632
      %v634 = vsel %vm157, %v631, %v633
      %636 = vst [vmem:[#allocation2 + $0x28] sm:$0xe0] %v634
      %v637 = vrot.slane %v624, 4
      %638 = vrot.lane.b32.xlu0 %v626, 126
      %v639 = vpop.permute.xlu0 %638
      %640 = vrot.lane.b32.xlu0 %v637, 126
      %v641 = vpop.permute.xlu0 %640
      %v642 = vsel %vm165, %v639, %v641
      %644 = vst [vmem:[#allocation2 + $0x48] sm:$0xe] %v642
      %645 = vrot.lane.b32.xlu0 %v623, 125
      %v646 = vpop.permute.xlu0 %645
      %647 = vrot.lane.b32.xlu0 %v624, 125
      %v648 = vpop.permute.xlu0 %647
      %v649 = vsel %vm173, %v646, %v648
      %651 = vst [vmem:[#allocation2 + $0x58] sm:$0xe0] %v649
      %652 = vrot.lane.b32.xlu0 %v626, 124
      %v653 = vpop.permute.xlu0 %652
      %654 = vrot.lane.b32.xlu0 %v637, 124
      %v655 = vpop.permute.xlu0 %654
      %v656 = vsel %vm181, %v653, %v655
      %658 = vst [vmem:[#allocation2 + $0x78] sm:$0xe] %v656
      %659 = vrot.lane.b32.xlu0 %v623, 123
      %v660 = vpop.permute.xlu0 %659
      %661 = vrot.lane.b32.xlu0 %v624, 123
      %v662 = vpop.permute.xlu0 %661
      %v663 = vsel %vm189, %v660, %v662
      %665 = vst [vmem:[#allocation2 + $0x88] sm:$0xe0] %v663
      %666 = vrot.lane.b32.xlu0 %v626, 122
      %v667 = vpop.permute.xlu0 %666
      %668 = vrot.lane.b32.xlu0 %v637, 122
      %v669 = vpop.permute.xlu0 %668
      %v670 = vsel %vm197, %v667, %v669
      %672 = vst [vmem:[#allocation2 + $0xa8] sm:$0xe] %v670
      %673 = vrot.lane.b32.xlu0 %v623, 121
      %v674 = vpop.permute.xlu0 %673
      %675 = vrot.lane.b32.xlu0 %v624, 121
      %v676 = vpop.permute.xlu0 %675
      %v677 = vsel %vm205, %v674, %v676
      %679 = vst [vmem:[#allocation2 + $0xb8] sm:$0xe0] %v677
      %v680 = vld [vmem:[%s1] sm:$0xff]
      %v681 = vld [vmem:[%s1 + $0x8] sm:$0xff]
      %v682 = vld [vmem:[%s1 + $0x10] sm:$0xff]
      %v683 = vld [vmem:[%s1 + $0x18] sm:$0xff]
      %v684 = vld [vmem:[%s1 + $0x20] sm:$0xff]
      %v685 = vld [vmem:[%s1 + $0x28] sm:$0xff]
      %v686 = vld [vmem:[%s1 + $0x30] sm:$0xff]
      %v687 = vld [vmem:[%s1 + $0x38] sm:$0xff]
      %v688 = vld [vmem:[%s1 + $0x40] sm:$0xff]
      %v689 = vld [vmem:[%s1 + $0x48] sm:$0xff]
      %v690 = vld [vmem:[%s1 + $0x50] sm:$0xff]
      %v691 = vld [vmem:[%s1 + $0x58] sm:$0xff]
      %v692 = vld [vmem:[%s1 + $0x60] sm:$0xff]
      %v693 = vld [vmem:[%s1 + $0x68] sm:$0xff]
      %v694 = vld [vmem:[%s1 + $0x70] sm:$0xff]
      %v695 = vld [vmem:[%s1 + $0x78] sm:$0xff]
      %v696 = vld [vmem:[%s1 + $0x80] sm:$0xff]
      %v697 = vld [vmem:[%s1 + $0x88] sm:$0xff]
      %v698 = vld [vmem:[%s1 + $0x90] sm:$0xff]
      %v699 = vld [vmem:[%s1 + $0x98] sm:$0xff]
      %v700 = vld [vmem:[%s1 + $0xa0] sm:$0xff]
      %v701 = vld [vmem:[%s1 + $0xa8] sm:$0xff]
      %v702 = vld [vmem:[%s1 + $0xb0] sm:$0xff]
      %v703 = vld [vmem:[%s1 + $0xb8] sm:$0xff]
      %v704 = vld [vmem:[%s1 + $0xc0] sm:$0xff]
      %v705 = vld [vmem:[%s1 + $0xc8] sm:$0xff]
      %v706 = vld [vmem:[%s1 + $0xd0] sm:$0xff]
      %v707 = vld [vmem:[%s1 + $0xd8] sm:$0xff]
      %v708 = vld [vmem:[%s1 + $0xe0] sm:$0xff]
      %v709 = vld [vmem:[%s1 + $0xe8] sm:$0xff]
      %v710 = vld [vmem:[%s1 + $0xf0] sm:$0xff]
      %v711 = vld [vmem:[%s1 + $0xf8] sm:$0xff]
      %v712 = vld [vmem:[#allocation2] sm:$0xff]
      %v713 = vld [vmem:[#allocation2 + $0x8] sm:$0xff]
      %v714 = vld [vmem:[#allocation2 + $0x10] sm:$0xff]
      %v715 = vld [vmem:[#allocation2 + $0x18] sm:$0xff]
      %v716 = vld [vmem:[#allocation2 + $0x20] sm:$0xff]
      %v717 = vld [vmem:[#allocation2 + $0x28] sm:$0xff]
      %v718 = vld [vmem:[#allocation2 + $0x30] sm:$0xff]
      %v719 = vld [vmem:[#allocation2 + $0x38] sm:$0xff]
      %v720 = vld [vmem:[#allocation2 + $0x40] sm:$0xff]
      %v721 = vld [vmem:[#allocation2 + $0x48] sm:$0xff]
      %v722 = vld [vmem:[#allocation2 + $0x50] sm:$0xff]
      %v723 = vld [vmem:[#allocation2 + $0x58] sm:$0xff]
      %v724 = vld [vmem:[#allocation2 + $0x60] sm:$0xff]
      %v725 = vld [vmem:[#allocation2 + $0x68] sm:$0xff]
      %v726 = vld [vmem:[#allocation2 + $0x70] sm:$0xff]
      %v727 = vld [vmem:[#allocation2 + $0x78] sm:$0xff]
      %v728 = vld [vmem:[#allocation2 + $0x80] sm:$0xff]
      %v729 = vld [vmem:[#allocation2 + $0x88] sm:$0xff]
      %v730 = vld [vmem:[#allocation2 + $0x90] sm:$0xff]
      %v731 = vld [vmem:[#allocation2 + $0x98] sm:$0xff]
      %v732 = vld [vmem:[#allocation2 + $0xa0] sm:$0xff]
      %v733 = vld [vmem:[#allocation2 + $0xa8] sm:$0xff]
      %v734 = vld [vmem:[#allocation2 + $0xb0] sm:$0xff]
      %v735 = vld [vmem:[#allocation2 + $0xb8] sm:$0xff]
      %v736 = vld [vmem:[#allocation2 + $0xc0] sm:$0xff]
      %v737 = vld [vmem:[#allocation2 + $0xc8] sm:$0xff]
      %vm738 = vcmask 850944
      %v740 = vsel %vm738, %v680, 0
      %v743 = vsel %vm738, %v681, 0
      %v746 = vsel %vm738, %v682, 0
      %v749 = vsel %vm738, %v683, 0
      %v752 = vsel %vm738, %v684, 0
      %v755 = vsel %vm738, %v685, 0
      %v758 = vsel %vm738, %v686, 0
      %v761 = vsel %vm738, %v687, 0
      %v764 = vsel %vm738, %v688, 0
      %v767 = vsel %vm738, %v689, 0
      %v770 = vsel %vm738, %v690, 0
      %v773 = vsel %vm738, %v691, 0
      %v776 = vsel %vm738, %v692, 0
      %v779 = vsel %vm738, %v693, 0
      %v782 = vsel %vm738, %v694, 0
      %v785 = vsel %vm738, %v695, 0
      %v788 = vsel %vm738, %v696, 0
      %v791 = vsel %vm738, %v697, 0
      %v794 = vsel %vm738, %v698, 0
      %v797 = vsel %vm738, %v699, 0
      %v800 = vsel %vm738, %v700, 0
      %v803 = vsel %vm738, %v701, 0
      %v806 = vsel %vm738, %v702, 0
      %v809 = vsel %vm738, %v703, 0
      %v812 = vsel %vm738, %v704, 0
      %v815 = vsel %vm738, %v705, 0
      %v818 = vsel %vm738, %v706, 0
      %v821 = vsel %vm738, %v707, 0
      %v824 = vsel %vm738, %v708, 0
      %v827 = vsel %vm738, %v709, 0
      %v830 = vsel %vm738, %v710, 0
      %v833 = vsel %vm738, %v711, 0
      %835 = vmatpush.msra.mxu0 0.0
      %836 = vmatpush.msra.mxu0 0.0
      %837 = vmatpush.msra.mxu0 0.0
      %838 = vmatpush.msra.mxu0 %v736
      %839 = vmatpush.msra.mxu0 %v734
      %840 = vmatpush.msra.mxu0 %v732
      %841 = vmatpush.msra.mxu0 %v730
      %842 = vmatpush.msra.mxu0 %v728
      %843 = vmatpush.msra.mxu0 %v726
      %844 = vmatpush.msra.mxu0 %v724
      %845 = vmatpush.msra.mxu0 %v722
      %846 = vmatpush.msra.mxu0 %v720
      %847 = vmatpush.msra.mxu0 %v718
      %848 = vmatpush.msra.mxu0 %v716
      %849 = vmatpush.msra.mxu0 %v714
      %850 = vmatpush.msra.mxu0 %v712
      %851 = vmatmul.f32.gmra.mxu0 %v740
      %v852 = vpop.f32.mrf.mxu0
      %v853 = vadd.f32 0.0, %v852
      %854 = vmatmul.f32.gmra.mxu0 %v743
      %v855 = vpop.f32.mrf.mxu0
      %v856 = vadd.f32 0.0, %v855
      %857 = vmatmul.f32.gmra.mxu0 %v746
      %v858 = vpop.f32.mrf.mxu0
      %v859 = vadd.f32 0.0, %v858
      %860 = vmatmul.f32.gmra.mxu0 %v749
      %v861 = vpop.f32.mrf.mxu0
      %v862 = vadd.f32 0.0, %v861
      %863 = vmatmul.f32.gmra.mxu0 %v752
      %v864 = vpop.f32.mrf.mxu0
      %v865 = vadd.f32 0.0, %v864
      %866 = vmatmul.f32.gmra.mxu0 %v755
      %v867 = vpop.f32.mrf.mxu0
      %v868 = vadd.f32 0.0, %v867
      %869 = vmatmul.f32.gmra.mxu0 %v758
      %v870 = vpop.f32.mrf.mxu0
      %v871 = vadd.f32 0.0, %v870
      %872 = vmatmul.f32.gmra.mxu0 %v761
      %v873 = vpop.f32.mrf.mxu0
      %v874 = vadd.f32 0.0, %v873
      %875 = vmatmul.f32.gmra.mxu0 %v764
      %v876 = vpop.f32.mrf.mxu0
      %v877 = vadd.f32 0.0, %v876
      %878 = vmatmul.f32.gmra.mxu0 %v767
      %v879 = vpop.f32.mrf.mxu0
      %v880 = vadd.f32 0.0, %v879
      %881 = vmatmul.f32.gmra.mxu0 %v770
      %v882 = vpop.f32.mrf.mxu0
      %v883 = vadd.f32 0.0, %v882
      %884 = vmatmul.f32.gmra.mxu0 %v773
      %v885 = vpop.f32.mrf.mxu0
      %v886 = vadd.f32 0.0, %v885
      %887 = vmatmul.f32.gmra.mxu0 %v776
      %v888 = vpop.f32.mrf.mxu0
      %v889 = vadd.f32 0.0, %v888
      %890 = vmatmul.f32.gmra.mxu0 %v779
      %v891 = vpop.f32.mrf.mxu0
      %v892 = vadd.f32 0.0, %v891
      %893 = vmatmul.f32.gmra.mxu0 %v782
      %v894 = vpop.f32.mrf.mxu0
      %v895 = vadd.f32 0.0, %v894
      %896 = vmatmul.f32.gmra.mxu0 %v785
      %v897 = vpop.f32.mrf.mxu0
      %v898 = vadd.f32 0.0, %v897
      %899 = vmatmul.f32.gmra.mxu0 %v788
      %v900 = vpop.f32.mrf.mxu0
      %v901 = vadd.f32 0.0, %v900
      %902 = vmatmul.f32.gmra.mxu0 %v791
      %v903 = vpop.f32.mrf.mxu0
      %v904 = vadd.f32 0.0, %v903
      %905 = vmatmul.f32.gmra.mxu0 %v794
      %v906 = vpop.f32.mrf.mxu0
      %v907 = vadd.f32 0.0, %v906
      %908 = vmatmul.f32.gmra.mxu0 %v797
      %v909 = vpop.f32.mrf.mxu0
      %v910 = vadd.f32 0.0, %v909
      %911 = vmatmul.f32.gmra.mxu0 %v800
      %v912 = vpop.f32.mrf.mxu0
      %v913 = vadd.f32 0.0, %v912
      %914 = vmatmul.f32.gmra.mxu0 %v803
      %v915 = vpop.f32.mrf.mxu0
      %v916 = vadd.f32 0.0, %v915
      %917 = vmatmul.f32.gmra.mxu0 %v806
      %v918 = vpop.f32.mrf.mxu0
      %v919 = vadd.f32 0.0, %v918
      %920 = vmatmul.f32.gmra.mxu0 %v809
      %v921 = vpop.f32.mrf.mxu0
      %v922 = vadd.f32 0.0, %v921
      %923 = vmatmul.f32.gmra.mxu0 %v812
      %v924 = vpop.f32.mrf.mxu0
      %v925 = vadd.f32 0.0, %v924
      %926 = vmatmul.f32.gmra.mxu0 %v815
      %v927 = vpop.f32.mrf.mxu0
      %v928 = vadd.f32 0.0, %v927
      %929 = vmatmul.f32.gmra.mxu0 %v818
      %v930 = vpop.f32.mrf.mxu0
      %v931 = vadd.f32 0.0, %v930
      %932 = vmatmul.f32.gmra.mxu0 %v821
      %v933 = vpop.f32.mrf.mxu0
      %v934 = vadd.f32 0.0, %v933
      %935 = vmatmul.f32.gmra.mxu0 %v824
      %v936 = vpop.f32.mrf.mxu0
      %v937 = vadd.f32 0.0, %v936
      %938 = vmatmul.f32.gmra.mxu0 %v827
      %v939 = vpop.f32.mrf.mxu0
      %v940 = vadd.f32 0.0, %v939
      %941 = vmatmul.f32.gmra.mxu0 %v830
      %v942 = vpop.f32.mrf.mxu0
      %v943 = vadd.f32 0.0, %v942
      %944 = vmatmul.f32.gmra.mxu0 %v833
      %v945 = vpop.f32.mrf.mxu0
      %v946 = vadd.f32 0.0, %v945
      %947 = vdwg.mxu0
      %948 = vmatpush.msra.mxu0 0.0
      %949 = vmatpush.msra.mxu0 0.0
      %950 = vmatpush.msra.mxu0 0.0
      %951 = vmatpush.msra.mxu0 %v737
      %952 = vmatpush.msra.mxu0 %v735
      %953 = vmatpush.msra.mxu0 %v733
      %954 = vmatpush.msra.mxu0 %v731
      %955 = vmatpush.msra.mxu0 %v729
      %956 = vmatpush.msra.mxu0 %v727
      %957 = vmatpush.msra.mxu0 %v725
      %958 = vmatpush.msra.mxu0 %v723
      %959 = vmatpush.msra.mxu0 %v721
      %960 = vmatpush.msra.mxu0 %v719
      %961 = vmatpush.msra.mxu0 %v717
      %962 = vmatpush.msra.mxu0 %v715
      %963 = vmatpush.msra.mxu0 %v713
      %964 = vmatmul.f32.gmra.mxu0 %v740
      %v965 = vpop.f32.mrf.mxu0
      %v966 = vadd.f32 0.0, %v965
      %967 = vmatmul.f32.gmra.mxu0 %v743
      %v968 = vpop.f32.mrf.mxu0
      %v969 = vadd.f32 0.0, %v968
      %970 = vmatmul.f32.gmra.mxu0 %v746
      %v971 = vpop.f32.mrf.mxu0
      %v972 = vadd.f32 0.0, %v971
      %973 = vmatmul.f32.gmra.mxu0 %v749
      %v974 = vpop.f32.mrf.mxu0
      %v975 = vadd.f32 0.0, %v974
      %976 = vmatmul.f32.gmra.mxu0 %v752
      %v977 = vpop.f32.mrf.mxu0
      %v978 = vadd.f32 0.0, %v977
      %979 = vmatmul.f32.gmra.mxu0 %v755
      %v980 = vpop.f32.mrf.mxu0
      %v981 = vadd.f32 0.0, %v980
      %982 = vmatmul.f32.gmra.mxu0 %v758
      %v983 = vpop.f32.mrf.mxu0
      %v984 = vadd.f32 0.0, %v983
      %985 = vmatmul.f32.gmra.mxu0 %v761
      %v986 = vpop.f32.mrf.mxu0
      %v987 = vadd.f32 0.0, %v986
      %988 = vmatmul.f32.gmra.mxu0 %v764
      %v989 = vpop.f32.mrf.mxu0
      %v990 = vadd.f32 0.0, %v989
      %991 = vmatmul.f32.gmra.mxu0 %v767
      %v992 = vpop.f32.mrf.mxu0
      %v993 = vadd.f32 0.0, %v992
      %994 = vmatmul.f32.gmra.mxu0 %v770
      %v995 = vpop.f32.mrf.mxu0
      %v996 = vadd.f32 0.0, %v995
      %997 = vmatmul.f32.gmra.mxu0 %v773
      %v998 = vpop.f32.mrf.mxu0
      %v999 = vadd.f32 0.0, %v998
      %1000 = vmatmul.f32.gmra.mxu0 %v776
      %v1001 = vpop.f32.mrf.mxu0
      %v1002 = vadd.f32 0.0, %v1001
      %1003 = vmatmul.f32.gmra.mxu0 %v779
      %v1004 = vpop.f32.mrf.mxu0
      %v1005 = vadd.f32 0.0, %v1004
      %1006 = vmatmul.f32.gmra.mxu0 %v782
      %v1007 = vpop.f32.mrf.mxu0
      %v1008 = vadd.f32 0.0, %v1007
      %1009 = vmatmul.f32.gmra.mxu0 %v785
      %v1010 = vpop.f32.mrf.mxu0
      %v1011 = vadd.f32 0.0, %v1010
      %1012 = vmatmul.f32.gmra.mxu0 %v788
      %v1013 = vpop.f32.mrf.mxu0
      %v1014 = vadd.f32 0.0, %v1013
      %1015 = vmatmul.f32.gmra.mxu0 %v791
      %v1016 = vpop.f32.mrf.mxu0
      %v1017 = vadd.f32 0.0, %v1016
      %1018 = vmatmul.f32.gmra.mxu0 %v794
      %v1019 = vpop.f32.mrf.mxu0
      %v1020 = vadd.f32 0.0, %v1019
      %1021 = vmatmul.f32.gmra.mxu0 %v797
      %v1022 = vpop.f32.mrf.mxu0
      %v1023 = vadd.f32 0.0, %v1022
      %1024 = vmatmul.f32.gmra.mxu0 %v800
      %v1025 = vpop.f32.mrf.mxu0
      %v1026 = vadd.f32 0.0, %v1025
      %1027 = vmatmul.f32.gmra.mxu0 %v803
      %v1028 = vpop.f32.mrf.mxu0
      %v1029 = vadd.f32 0.0, %v1028
      %1030 = vmatmul.f32.gmra.mxu0 %v806
      %v1031 = vpop.f32.mrf.mxu0
      %v1032 = vadd.f32 0.0, %v1031
      %1033 = vmatmul.f32.gmra.mxu0 %v809
      %v1034 = vpop.f32.mrf.mxu0
      %v1035 = vadd.f32 0.0, %v1034
      %1036 = vmatmul.f32.gmra.mxu0 %v812
      %v1037 = vpop.f32.mrf.mxu0
      %v1038 = vadd.f32 0.0, %v1037
      %1039 = vmatmul.f32.gmra.mxu0 %v815
      %v1040 = vpop.f32.mrf.mxu0
      %v1041 = vadd.f32 0.0, %v1040
      %1042 = vmatmul.f32.gmra.mxu0 %v818
      %v1043 = vpop.f32.mrf.mxu0
      %v1044 = vadd.f32 0.0, %v1043
      %1045 = vmatmul.f32.gmra.mxu0 %v821
      %v1046 = vpop.f32.mrf.mxu0
      %v1047 = vadd.f32 0.0, %v1046
      %1048 = vmatmul.f32.gmra.mxu0 %v824
      %v1049 = vpop.f32.mrf.mxu0
      %v1050 = vadd.f32 0.0, %v1049
      %1051 = vmatmul.f32.gmra.mxu0 %v827
      %v1052 = vpop.f32.mrf.mxu0
      %v1053 = vadd.f32 0.0, %v1052
      %1054 = vmatmul.f32.gmra.mxu0 %v830
      %v1055 = vpop.f32.mrf.mxu0
      %v1056 = vadd.f32 0.0, %v1055
      %1057 = vmatmul.f32.gmra.mxu0 %v833
      %v1058 = vpop.f32.mrf.mxu0
      %v1059 = vadd.f32 0.0, %v1058
      %1060 = vdwg.mxu0
      %1061 = vst [vmem:[%s143] sm:$0xff] %v853
      %1062 = vst [vmem:[%s143 + $0x8] sm:$0xff] %v966
      %1063 = vst [vmem:[%s143 + $0x10] sm:$0xff] %v856
      %1064 = vst [vmem:[%s143 + $0x18] sm:$0xff] %v969
      %1065 = vst [vmem:[%s143 + $0x20] sm:$0xff] %v859
      %1066 = vst [vmem:[%s143 + $0x28] sm:$0xff] %v972
      %1067 = vst [vmem:[%s143 + $0x30] sm:$0xff] %v862
      %1068 = vst [vmem:[%s143 + $0x38] sm:$0xff] %v975
      %1069 = vst [vmem:[%s143 + $0x40] sm:$0xff] %v865
      %1070 = vst [vmem:[%s143 + $0x48] sm:$0xff] %v978
      %1071 = vst [vmem:[%s143 + $0x50] sm:$0xff] %v868
      %1072 = vst [vmem:[%s143 + $0x58] sm:$0xff] %v981
      %1073 = vst [vmem:[%s143 + $0x60] sm:$0xff] %v871
      %1074 = vst [vmem:[%s143 + $0x68] sm:$0xff] %v984
      %1075 = vst [vmem:[%s143 + $0x70] sm:$0xff] %v874
      %1076 = vst [vmem:[%s143 + $0x78] sm:$0xff] %v987
      %1077 = vst [vmem:[%s143 + $0x80] sm:$0xff] %v877
      %1078 = vst [vmem:[%s143 + $0x88] sm:$0xff] %v990
      %1079 = vst [vmem:[%s143 + $0x90] sm:$0xff] %v880
      %1080 = vst [vmem:[%s143 + $0x98] sm:$0xff] %v993
      %1081 = vst [vmem:[%s143 + $0xa0] sm:$0xff] %v883
      %1082 = vst [vmem:[%s143 + $0xa8] sm:$0xff] %v996
      %1083 = vst [vmem:[%s143 + $0xb0] sm:$0xff] %v886
      %1084 = vst [vmem:[%s143 + $0xb8] sm:$0xff] %v999
      %1085 = vst [vmem:[%s143 + $0xc0] sm:$0xff] %v889
      %1086 = vst [vmem:[%s143 + $0xc8] sm:$0xff] %v1002
      %1087 = vst [vmem:[%s143 + $0xd0] sm:$0xff] %v892
      %1088 = vst [vmem:[%s143 + $0xd8] sm:$0xff] %v1005
      %1089 = vst [vmem:[%s143 + $0xe0] sm:$0xff] %v895
      %1090 = vst [vmem:[%s143 + $0xe8] sm:$0xff] %v1008
      %1091 = vst [vmem:[%s143 + $0xf0] sm:$0xff] %v898
      %1092 = vst [vmem:[%s143 + $0xf8] sm:$0xff] %v1011
      %1093 = vst [vmem:[%s143 + $0x100] sm:$0xff] %v901
      %1094 = vst [vmem:[%s143 + $0x108] sm:$0xff] %v1014
      %1095 = vst [vmem:[%s143 + $0x110] sm:$0xff] %v904
      %1096 = vst [vmem:[%s143 + $0x118] sm:$0xff] %v1017
      %1097 = vst [vmem:[%s143 + $0x120] sm:$0xff] %v907
      %1098 = vst [vmem:[%s143 + $0x128] sm:$0xff] %v1020
      %1099 = vst [vmem:[%s143 + $0x130] sm:$0xff] %v910
      %1100 = vst [vmem:[%s143 + $0x138] sm:$0xff] %v1023
      %1101 = vst [vmem:[%s143 + $0x140] sm:$0xff] %v913
      %1102 = vst [vmem:[%s143 + $0x148] sm:$0xff] %v1026
      %1103 = vst [vmem:[%s143 + $0x150] sm:$0xff] %v916
      %1104 = vst [vmem:[%s143 + $0x158] sm:$0xff] %v1029
      %1105 = vst [vmem:[%s143 + $0x160] sm:$0xff] %v919
      %1106 = vst [vmem:[%s143 + $0x168] sm:$0xff] %v1032
      %1107 = vst [vmem:[%s143 + $0x170] sm:$0xff] %v922
      %1108 = vst [vmem:[%s143 + $0x178] sm:$0xff] %v1035
      %1109 = vst [vmem:[%s143 + $0x180] sm:$0xff] %v925
      %1110 = vst [vmem:[%s143 + $0x188] sm:$0xff] %v1038
      %1111 = vst [vmem:[%s143 + $0x190] sm:$0xff] %v928
      %1112 = vst [vmem:[%s143 + $0x198] sm:$0xff] %v1041
      %1113 = vst [vmem:[%s143 + $0x1a0] sm:$0xff] %v931
      %1114 = vst [vmem:[%s143 + $0x1a8] sm:$0xff] %v1044
      %1115 = vst [vmem:[%s143 + $0x1b0] sm:$0xff] %v934
      %1116 = vst [vmem:[%s143 + $0x1b8] sm:$0xff] %v1047
      %1117 = vst [vmem:[%s143 + $0x1c0] sm:$0xff] %v937
      %1118 = vst [vmem:[%s143 + $0x1c8] sm:$0xff] %v1050
      %1119 = vst [vmem:[%s143 + $0x1d0] sm:$0xff] %v940
      %1120 = vst [vmem:[%s143 + $0x1d8] sm:$0xff] %v1053
      %1121 = vst [vmem:[%s143 + $0x1e0] sm:$0xff] %v943
      %1122 = vst [vmem:[%s143 + $0x1e8] sm:$0xff] %v1056
      %1123 = vst [vmem:[%s143 + $0x1f0] sm:$0xff] %v946
      %1124 = vst [vmem:[%s143 + $0x1f8] sm:$0xff] %v1059
      %p1125 = scmp.lt.s32.totalorder %s13, 1
      %s1126 = scalar_select %p1125, %s13, 1
      %s1127 = smul.addr %s1126, 64
      %s1128 = smul.addr %s1127, 8
      %s1129 = scalar_lea.vmem %s2, %s1128
      // Predicated region
      $region29: #{cnn_spectrogram_forward.1} parent=27 // pred_check
        %p1130 = pneg %p78
      $region30: #{cnn_spectrogram_forward.1} parent=27 // pred_check_branch
        %1132 = sbr.rel (%p1130) target = $region32
      $region31: #{cnn_spectrogram_forward.1} parent=27 // pred_region
        _
      $region32: #{cnn_spectrogram_forward.1} parent=27 // pred_fallthru
        _
    $region28: #{cnn_spectrogram_forward.1} parent=5 // pred_fallthru
      _
    %p1133 = scmp.le.s32.totalorder 2, %s8
    // Predicated region
    $region33: #{cnn_spectrogram_forward.1} parent=5 // pred_check
      %p1134 = pneg %p1133
    $region34: #{cnn_spectrogram_forward.1} parent=5 // pred_check_branch
      %1136 = sbr.rel (%p1134) target = $region36
    $region35: #{cnn_spectrogram_forward.1} parent=5 // pred_region
      %s1137 = ssub.s32 %s8, 2
      // Predicated region
      $region37: #{cnn_spectrogram_forward.1} parent=35 // pred_check
        %p1138 = pneg %p84
      $region38: #{cnn_spectrogram_forward.1} parent=35 // pred_check_branch
        %1140 = sbr.rel (%p1138) target = $region40
      $region39: #{cnn_spectrogram_forward.1} parent=35 // pred_region
        %p1141 = scmp.lt.s32.totalorder %s14, 1
        %s1142 = scalar_select %p1141, %s14, 1
        %s1143 = smul.addr %s1142, 64
        %s1144 = smul.addr %s1143, 8
        %s1145 = scalar_lea.vmem %s2, %s1144
      $region40: #{cnn_spectrogram_forward.1} parent=35 // pred_fallthru
        _
    $region36: #{cnn_spectrogram_forward.1} parent=5 // pred_fallthru
      _
  $region6: #{cnn_spectrogram_forward.1} parent=0 // loop_footer
    %s12 = sadd.s32 1, %s8
  $region7: #{cnn_spectrogram_forward.1} parent=0 // loop_footer_branch
    %7 = sbr.rel target = $region3
  $region8: #{cnn_spectrogram_forward.1} parent=0 // loop_exit
    _

</llo_original>
